<compile_context>
chip_gen: v7x
topology: tpu7x:2x2x1
jax: 0.10.0
libtpu: 0.0.40
codegen_flags: <defaults>
</compile_context>

<pallas_src>
import functools

import jax
import jax.numpy as jnp
from jax.experimental import pallas as pl
from jax.experimental.pallas import tpu as pltpu


def _round_up(v, m):
    return (v + m - 1) // m * m


def _vmem_capacity_bytes():
    try:
        info = pltpu.get_tpu_info()
        cap = getattr(info, "vmem_capacity_bytes", None)
        if cap:
            return int(cap)
    except Exception:
        pass
    return 64 * 1024 * 1024  # conservative fallback (v7x per-TC VMEM)


def _pick_tiles(Ho, Wo, Wp_pad, K, Cpad, itemsize, budget_bytes):
    """Pick (row-strip height TH, channel block Cb) so the per-step VMEM
    footprint — manual input double buffer, auto-pipelined output double
    buffer, weight/bias tiles and f32 in-kernel temporaries — fits budget."""

    def footprint(th, cb):
        strip = 2 * (th + K - 1) * Wp_pad * cb * itemsize   # input dbl buffer
        outb = 2 * th * Wo * cb * itemsize                  # output dbl buffer
        wtab = 2 * (K * K + 1) * cb * 4                     # taps + bias
        temps = (2 * Wp_pad + 2 * Wo) * cb * 4              # f32 row/tap/acc
        return strip + outb + wtab + temps

    th = max(1, min(8, Ho))
    cb = Cpad
    while cb > 128 and (Cpad % cb != 0 or footprint(th, cb) > budget_bytes):
        cb -= 128
    while th > 1 and footprint(th, cb) > budget_bytes:
        th -= 1
    # TODO(synk): add W (lane-row) tiling for extreme widths where even
    # (TH=1, Cb=128) exceeds the VMEM budget.
    return th, cb, footprint(th, cb)


def _make_kernel(*, TH, K, Wo, Wp_pad, Cb, HS, n_cblocks):
    def kernel(x_hbm, w_ref, b_ref, o_ref, buf, sem):
        # x_hbm: HBM ref (N, Hp_pad, Wp_pad, Cpad)   (memory_space=pl.ANY)
        # w_ref: VMEM (K*K, Cb) f32 per-channel taps
        # b_ref: VMEM (1, Cb) f32 per-channel bias
        # o_ref: VMEM (1, TH, Wo, Cb) output strip
        # buf  : VMEM (2, HS, Wp_pad, Cb) input-strip double buffer
        # sem  : DMA semaphores (2,)
        n = pl.program_id(0)
        c = pl.program_id(1)
        h = pl.program_id(2)
        slot = h % 2

        def strip_src(t):
            if n_cblocks == 1:
                return x_hbm.at[n, pl.ds(t * TH, HS), :, :]
            return x_hbm.at[n, pl.ds(t * TH, HS), :, pl.ds(c * Cb, Cb)]

        def start_fetch(t, s):
            pltpu.make_async_copy(strip_src(t), buf.at[s], sem.at[s]).start()

        # Prime the first strip of every (n, channel-block) scan, then keep the
        # next strip in flight while computing the current one.  (Manual DMA
        # because the K-1 row halo makes input windows overlap, which Blocked
        # BlockSpecs cannot express.)
        @pl.when(h == 0)
        def _():
            start_fetch(0, 0)

        @pl.when(h + 1 < pl.num_programs(2))
        def _():
            start_fetch(h + 1, 1 - slot)

        pltpu.make_async_copy(strip_src(h), buf.at[slot], sem.at[slot]).wait()

        # Hoist the K*K taps and the bias into vregs once per grid step.
        taps = [w_ref[t:t + 1, :] for t in range(K * K)]   # each (1, Cb) f32
        bias = b_ref[0:1, :]                               # (1, Cb) f32

        # Row-strip MAC loop: the f32 accumulator is a single output row
        # (Wo, Cb) — a few vregs — so it never round-trips VMEM per tap.
        for r in range(TH):
            acc = None
            for kh in range(K):
                # One load per kh row at full padded width; kw taps are
                # in-register shifts (slices of this value), not K independent
                # VMEM ref slices.
                row = buf[slot, r + kh, :, :].astype(jnp.float32)  # (Wp_pad, Cb)
                for kw in range(K):
                    tap = row[kw:kw + Wo, :]
                    term = tap * taps[kh * K + kw]
                    acc = term if acc is None else acc + term
            # Bias folded into the final (lane-dense) store.
            o_ref[0, r, :, :] = (acc + bias).astype(o_ref.dtype)

    return kernel


def depthwise_conv2d_nhwc(x, weight, bias, *, padding=0, compute_dtype=None):
    """Depthwise conv on channel-minor (NHWC) input — the Pallas hot path.
    Use this entry point directly in NHWC models to avoid NCHW<->NHWC passes.

    x: (N, H, W, C); weight: (C, 1, K, K); bias: (C,)."""
    N, H, W, C = x.shape
    Cw, one, K, Kw = weight.shape
    assert Cw == C and one == 1 and Kw == K

    dtype = jax.dtypes.canonicalize_dtype(compute_dtype or x.dtype)

    Ho = H + 2 * padding - (K - 1)
    Wo = W + 2 * padding - (K - 1)
    Wp = Wo + K - 1                 # = W + 2*padding
    Wp_pad = _round_up(Wp, 8)       # keep the row slab sublane-aligned
    Cpad = _round_up(C, 128)        # channels on lanes -> lane-dense stores

    cap = _vmem_capacity_bytes()
    TH, Cb, fp = _pick_tiles(Ho, Wo, Wp_pad, K, Cpad, dtype.itemsize, cap // 2)

    Ho_pad = _round_up(Ho, TH)
    Hp_pad = Ho_pad + K - 1
    HT = Ho_pad // TH
    CB = Cpad // Cb
    HS = TH + K - 1

    # Single fused relayout pass: optional cast + zero halo + H/W/C padding.
    xp = jnp.pad(
        x.astype(dtype),
        ((0, 0),
         (padding, Hp_pad - H - padding),
         (padding, Wp_pad - W - padding),
         (0, Cpad - C)),
    )

    # Weights -> (K*K, Cpad) f32 vector taps; bias -> (1, Cpad) f32.
    w = jnp.transpose(weight.reshape(C, K * K), (1, 0)).astype(jnp.float32)
    w = jnp.pad(w, ((0, 0), (0, Cpad - C)))
    b = jnp.pad(bias.astype(jnp.float32).reshape(1, C), ((0, 0), (0, Cpad - C)))

    kernel = _make_kernel(TH=TH, K=K, Wo=Wo, Wp_pad=Wp_pad, Cb=Cb, HS=HS,
                          n_cblocks=CB)

    vmem_limit = int(min(0.85 * cap, max(32 * 1024 * 1024, 2 * fp)))

    out = pl.pallas_call(
        kernel,
        out_shape=jax.ShapeDtypeStruct((N, Ho_pad, Wo, Cpad), dtype),
        grid_spec=pltpu.PrefetchScalarGridSpec(
            num_scalar_prefetch=0,
            grid=(N, CB, HT),
            in_specs=[
                pl.BlockSpec(memory_space=pl.ANY),                 # x stays in HBM
                pl.BlockSpec((K * K, Cb), lambda n, c, h: (0, c)),
                pl.BlockSpec((1, Cb), lambda n, c, h: (0, c)),
            ],
            out_specs=pl.BlockSpec((1, TH, Wo, Cb), lambda n, c, h: (n, h, 0, c)),
            scratch_shapes=[
                pltpu.VMEM((2, HS, Wp_pad, Cb), dtype),
                pltpu.SemaphoreType.DMA((2,)),
            ],
        ),
        compiler_params=pltpu.CompilerParams(
            # Row-strip axis must stay "arbitrary" (sequential manual DMA scan);
            # batch / channel-block axes can shard across v7x's 2 TensorCores.
            dimension_semantics=("parallel", "parallel", "arbitrary"),
            vmem_limit_bytes=vmem_limit,
        ),
    )(xp, w, b)

    return out[:, :Ho, :, :C]


@functools.partial(jax.jit,
                   static_argnames=("stride", "padding", "dilation",
                                    "compute_dtype"))
def depthwise_conv2d(x, weight, bias, *, stride=1, padding=0, dilation=1,
                     compute_dtype=None):
    """Drop-in NCHW forward of the PyTorch DepthwiseConv2D module
    (nn.Conv2d with groups == in_channels == out_channels, zero padding).

    x: (N, C, H, W); weight: (C, 1, K, K); bias: (C,).
    compute_dtype=jnp.bfloat16 selects the reduced-HBM-traffic path
    (f32 accumulation in-kernel; output cast back to x.dtype)."""
    # TODO(synk): stride > 1, dilation > 1, non-'zeros' padding modes and
    # general groups != in_channels of nn.Conv2d are not implemented in the
    # Pallas hot path.
    assert stride == 1 and dilation == 1

    x_nhwc = jnp.transpose(x, (0, 2, 3, 1))
    y = depthwise_conv2d_nhwc(x_nhwc, weight, bias, padding=padding,
                              compute_dtype=compute_dtype)
    # Back to NCHW; the slice / cast fuse into this transpose pass.
    return jnp.transpose(y, (0, 3, 1, 2)).astype(x.dtype)


if __name__ == "__main__":
    # Depthwise configuration of the module: in_channels = out_channels =
    # groups = 4, kernel_size = 3, stride = 1, padding = 1, bias = True.
    N, C, H, W, K = 2, 4, 16, 16, 3

    key = jax.random.PRNGKey(0)
    key_x, key_w, key_b = jax.random.split(key, 3)
    x = jax.random.normal(key_x, (N, C, H, W), dtype=jnp.float32)
    weight = jax.random.normal(key_w, (C, 1, K, K), dtype=jnp.float32) * 0.1
    bias = jax.random.normal(key_b, (C,), dtype=jnp.float32) * 0.1

    out = depthwise_conv2d(x, weight, bias, padding=1)
    out = jax.block_until_ready(out)

    # Reference: lax depthwise conv (feature_group_count = C) + bias.
    ref = jax.lax.conv_general_dilated(
        x, weight, window_strides=(1, 1), padding=((1, 1), (1, 1)),
        dimension_numbers=("NCHW", "OIHW", "NCHW"), feature_group_count=C,
    ) + bias.reshape(1, C, 1, 1)

    assert out.shape == (N, C, H, W), out.shape
    assert jnp.allclose(out, ref, atol=1e-4, rtol=1e-4), \
        float(jnp.max(jnp.abs(out - ref)))

    # Reduced-precision fast path (halves HBM traffic; f32 accumulation).
    out_bf16 = depthwise_conv2d(x, weight, bias, padding=1,
                                compute_dtype=jnp.bfloat16)
    out_bf16 = jax.block_until_ready(out_bf16)
    assert jnp.allclose(out_bf16, ref, atol=5e-2, rtol=5e-2), \
        float(jnp.max(jnp.abs(out_bf16 - ref)))

    print("KERNEL_OK")
</pallas_src>

<mosaic_0001>
module attributes {stable_mosaic.version = 11 : i64} {
  func.func @kernel(%arg0: i32, %arg1: i32, %arg2: i32, %arg3: memref<2x18x24x128xf32, #tpu.memory_space<any>>, %arg4: memref<9x128xf32, #tpu.memory_space<vmem>>, %arg5: memref<1x128xf32, #tpu.memory_space<vmem>>, %arg6: memref<1x8x16x128xf32, #tpu.memory_space<vmem>>, %arg7: memref<2x10x24x128xf32, #tpu.memory_space<vmem>>, %arg8: memref<2x!tpu.dma_semaphore, #tpu.memory_space<semaphore_mem>>) attributes {dimension_semantics = [#tpu.dimension_semantics<parallel>, #tpu.dimension_semantics<parallel>, #tpu.dimension_semantics<arbitrary>], iteration_bounds = array<i64: 2, 1, 2>, scalar_prefetch = 0 : i64, scratch_operands = 2 : i64, tpu.core_type = #tpu.core_type<tc>, window_params = [{}, {transform_indices = @transform_1, window_bounds = array<i64: 9, 128>}, {transform_indices = @transform_2, window_bounds = array<i64: 1, 128>}, {transform_indices = @transform_3, window_bounds = array<i64: 1, 8, 16, 128>}]} {
    %c2_i32 = arith.constant 2 : i32
    %c0_i32 = arith.constant 0 : i32
    %0 = arith.cmpi eq, %c2_i32, %c0_i32 : i32
    %c1_i32 = arith.constant 1 : i32
    %1 = arith.select %0, %c1_i32, %c2_i32 : i32
    %2 = arith.remsi %arg2, %1 : i32
    %c0_i32_0 = arith.constant 0 : i32
    %3 = arith.cmpi ne, %2, %c0_i32_0 : i32
    %c0_i32_1 = arith.constant 0 : i32
    %4 = arith.cmpi slt, %2, %c0_i32_1 : i32
    %c0_i32_2 = arith.constant 0 : i32
    %5 = arith.cmpi slt, %1, %c0_i32_2 : i32
    %6 = arith.xori %4, %5 : i1
    %7 = arith.andi %6, %3 : i1
    %8 = arith.addi %2, %1 : i32
    %9 = arith.select %7, %8, %2 : i32
    %c0_i32_3 = arith.constant 0 : i32
    %10 = arith.cmpi eq, %arg2, %c0_i32_3 : i32
    %11 = arith.extui %10 : i1 to i32
    %c0_i32_4 = arith.constant 0 : i32
    %12 = arith.cmpi ne, %11, %c0_i32_4 : i32
    scf.if %12 {
      %c0_i32_127 = arith.constant 0 : i32
      %c0_i32_128 = arith.constant 0 : i32
      %c0_i32_129 = arith.constant 0 : i32
      %c0_i32_130 = arith.constant 0 : i32
      %c0_i32_131 = arith.constant 0 : i32
      %426 = tpu.memref_slice %arg3[%arg0, %c0_i32_129, %c0_i32_130, %c0_i32_131] : memref<2x18x24x128xf32, #tpu.memory_space<any>> -> memref<1x10x24x128xf32, #tpu.memory_space<any>>
      %427 = tpu.memref_squeeze %426 : memref<1x10x24x128xf32, #tpu.memory_space<any>> -> memref<10x24x128xf32, #tpu.memory_space<any>>
      %c0_i32_132 = arith.constant 0 : i32
      %c0_i32_133 = arith.constant 0 : i32
      %c0_i32_134 = arith.constant 0 : i32
      %428 = tpu.memref_slice %arg7[%c0_i32_127, %c0_i32_132, %c0_i32_133, %c0_i32_134] : memref<2x10x24x128xf32, #tpu.memory_space<vmem>> -> memref<1x10x24x128xf32, #tpu.memory_space<vmem>>
      %429 = tpu.memref_squeeze %428 : memref<1x10x24x128xf32, #tpu.memory_space<vmem>> -> memref<10x24x128xf32, #tpu.memory_space<vmem>>
      %430 = tpu.memref_slice %arg8[%c0_i32_128] : memref<2x!tpu.dma_semaphore, #tpu.memory_space<semaphore_mem>> -> memref<1x!tpu.dma_semaphore, #tpu.memory_space<semaphore_mem>>
      %431 = tpu.memref_squeeze %430 : memref<1x!tpu.dma_semaphore, #tpu.memory_space<semaphore_mem>> -> memref<!tpu.dma_semaphore, #tpu.memory_space<semaphore_mem>>
      tpu.enqueue_dma source(%427 : memref<10x24x128xf32, #tpu.memory_space<any>>) target(%429 : memref<10x24x128xf32, #tpu.memory_space<vmem>>) target_semaphore(%431 : memref<!tpu.dma_semaphore, #tpu.memory_space<semaphore_mem>>)
    } else {
    }
    %c1_i32_5 = arith.constant 1 : i32
    %13 = arith.addi %arg2, %c1_i32_5 : i32
    %c2_i32_6 = arith.constant 2 : i32
    %14 = arith.cmpi slt, %13, %c2_i32_6 : i32
    %15 = arith.extui %14 : i1 to i32
    %c0_i32_7 = arith.constant 0 : i32
    %16 = arith.cmpi ne, %15, %c0_i32_7 : i32
    scf.if %16 {
      %c1_i32_127 = arith.constant 1 : i32
      %426 = arith.addi %arg2, %c1_i32_127 : i32
      %c1_i32_128 = arith.constant 1 : i32
      %427 = arith.subi %c1_i32_128, %9 : i32
      %c8_i32_129 = arith.constant 8 : i32
      %428 = arith.muli %426, %c8_i32_129 : i32
      %c0_i32_130 = arith.constant 0 : i32
      %c0_i32_131 = arith.constant 0 : i32
      %429 = tpu.memref_slice %arg3[%arg0, %428, %c0_i32_130, %c0_i32_131] : memref<2x18x24x128xf32, #tpu.memory_space<any>> -> memref<1x10x24x128xf32, #tpu.memory_space<any>>
      %430 = tpu.memref_squeeze %429 : memref<1x10x24x128xf32, #tpu.memory_space<any>> -> memref<10x24x128xf32, #tpu.memory_space<any>>
      %c0_i32_132 = arith.constant 0 : i32
      %c0_i32_133 = arith.constant 0 : i32
      %c0_i32_134 = arith.constant 0 : i32
      %431 = tpu.memref_slice %arg7[%427, %c0_i32_132, %c0_i32_133, %c0_i32_134] : memref<2x10x24x128xf32, #tpu.memory_space<vmem>> -> memref<1x10x24x128xf32, #tpu.memory_space<vmem>>
      %432 = tpu.memref_squeeze %431 : memref<1x10x24x128xf32, #tpu.memory_space<vmem>> -> memref<10x24x128xf32, #tpu.memory_space<vmem>>
      %433 = tpu.memref_slice %arg8[%427] : memref<2x!tpu.dma_semaphore, #tpu.memory_space<semaphore_mem>> -> memref<1x!tpu.dma_semaphore, #tpu.memory_space<semaphore_mem>>
      %434 = tpu.memref_squeeze %433 : memref<1x!tpu.dma_semaphore, #tpu.memory_space<semaphore_mem>> -> memref<!tpu.dma_semaphore, #tpu.memory_space<semaphore_mem>>
      tpu.enqueue_dma source(%430 : memref<10x24x128xf32, #tpu.memory_space<any>>) target(%432 : memref<10x24x128xf32, #tpu.memory_space<vmem>>) target_semaphore(%434 : memref<!tpu.dma_semaphore, #tpu.memory_space<semaphore_mem>>)
    } else {
    }
    %c8_i32 = arith.constant 8 : i32
    %17 = arith.muli %arg2, %c8_i32 : i32
    %c0_i32_8 = arith.constant 0 : i32
    %c0_i32_9 = arith.constant 0 : i32
    %18 = tpu.memref_slice %arg3[%arg0, %17, %c0_i32_8, %c0_i32_9] : memref<2x18x24x128xf32, #tpu.memory_space<any>> -> memref<1x10x24x128xf32, #tpu.memory_space<any>>
    %19 = tpu.memref_squeeze %18 : memref<1x10x24x128xf32, #tpu.memory_space<any>> -> memref<10x24x128xf32, #tpu.memory_space<any>>
    %c0_i32_10 = arith.constant 0 : i32
    %c0_i32_11 = arith.constant 0 : i32
    %c0_i32_12 = arith.constant 0 : i32
    %20 = tpu.memref_slice %arg7[%9, %c0_i32_10, %c0_i32_11, %c0_i32_12] : memref<2x10x24x128xf32, #tpu.memory_space<vmem>> -> memref<1x10x24x128xf32, #tpu.memory_space<vmem>>
    %21 = tpu.memref_squeeze %20 : memref<1x10x24x128xf32, #tpu.memory_space<vmem>> -> memref<10x24x128xf32, #tpu.memory_space<vmem>>
    %22 = tpu.memref_slice %arg8[%9] : memref<2x!tpu.dma_semaphore, #tpu.memory_space<semaphore_mem>> -> memref<1x!tpu.dma_semaphore, #tpu.memory_space<semaphore_mem>>
    %23 = tpu.memref_squeeze %22 : memref<1x!tpu.dma_semaphore, #tpu.memory_space<semaphore_mem>> -> memref<!tpu.dma_semaphore, #tpu.memory_space<semaphore_mem>>
    tpu.wait_dma2 semaphore(%23 : memref<!tpu.dma_semaphore, #tpu.memory_space<semaphore_mem>>) src(%19 : memref<10x24x128xf32, #tpu.memory_space<any>>) dst(%21 : memref<10x24x128xf32, #tpu.memory_space<vmem>>)
    %c0 = arith.constant 0 : index
    %c0_13 = arith.constant 0 : index
    %24 = vector.load %arg4[%c0, %c0_13] : memref<9x128xf32, #tpu.memory_space<vmem>>, vector<1x128xf32>
    %c1 = arith.constant 1 : index
    %c0_14 = arith.constant 0 : index
    %25 = vector.load %arg4[%c1, %c0_14] : memref<9x128xf32, #tpu.memory_space<vmem>>, vector<1x128xf32>
    %c2 = arith.constant 2 : index
    %c0_15 = arith.constant 0 : index
    %26 = vector.load %arg4[%c2, %c0_15] : memref<9x128xf32, #tpu.memory_space<vmem>>, vector<1x128xf32>
    %c3 = arith.constant 3 : index
    %c0_16 = arith.constant 0 : index
    %27 = vector.load %arg4[%c3, %c0_16] : memref<9x128xf32, #tpu.memory_space<vmem>>, vector<1x128xf32>
    %c4 = arith.constant 4 : index
    %c0_17 = arith.constant 0 : index
    %28 = vector.load %arg4[%c4, %c0_17] : memref<9x128xf32, #tpu.memory_space<vmem>>, vector<1x128xf32>
    %c5 = arith.constant 5 : index
    %c0_18 = arith.constant 0 : index
    %29 = vector.load %arg4[%c5, %c0_18] : memref<9x128xf32, #tpu.memory_space<vmem>>, vector<1x128xf32>
    %c6 = arith.constant 6 : index
    %c0_19 = arith.constant 0 : index
    %30 = vector.load %arg4[%c6, %c0_19] : memref<9x128xf32, #tpu.memory_space<vmem>>, vector<1x128xf32>
    %c7 = arith.constant 7 : index
    %c0_20 = arith.constant 0 : index
    %31 = vector.load %arg4[%c7, %c0_20] : memref<9x128xf32, #tpu.memory_space<vmem>>, vector<1x128xf32>
    %c8 = arith.constant 8 : index
    %c0_21 = arith.constant 0 : index
    %32 = vector.load %arg4[%c8, %c0_21] : memref<9x128xf32, #tpu.memory_space<vmem>>, vector<1x128xf32>
    %c0_22 = arith.constant 0 : index
    %c0_23 = arith.constant 0 : index
    %33 = vector.load %arg5[%c0_22, %c0_23] : memref<1x128xf32, #tpu.memory_space<vmem>>, vector<1x128xf32>
    %34 = arith.index_cast %9 : i32 to index
    %c0_24 = arith.constant 0 : index
    %c0_25 = arith.constant 0 : index
    %c0_26 = arith.constant 0 : index
    %35 = vector.load %arg7[%34, %c0_24, %c0_25, %c0_26] : memref<2x10x24x128xf32, #tpu.memory_space<vmem>>, vector<1x1x24x128xf32>
    %36 = vector.shape_cast %35 : vector<1x1x24x128xf32> to vector<24x128xf32>
    %37 = vector.extract_strided_slice %36 {offsets = [0, 0], sizes = [16, 128], strides = [1, 1]} : vector<24x128xf32> to vector<16x128xf32>
    %38 = vector.broadcast %24 : vector<1x128xf32> to vector<16x128xf32>
    %39 = arith.mulf %37, %38 : vector<16x128xf32>
    %40 = vector.extract_strided_slice %36 {offsets = [1, 0], sizes = [16, 128], strides = [1, 1]} : vector<24x128xf32> to vector<16x128xf32>
    %41 = vector.broadcast %25 : vector<1x128xf32> to vector<16x128xf32>
    %42 = arith.mulf %40, %41 : vector<16x128xf32>
    %43 = arith.addf %39, %42 : vector<16x128xf32>
    %44 = vector.extract_strided_slice %36 {offsets = [2, 0], sizes = [16, 128], strides = [1, 1]} : vector<24x128xf32> to vector<16x128xf32>
    %45 = vector.broadcast %26 : vector<1x128xf32> to vector<16x128xf32>
    %46 = arith.mulf %44, %45 : vector<16x128xf32>
    %47 = arith.addf %43, %46 : vector<16x128xf32>
    %48 = arith.index_cast %9 : i32 to index
    %c1_27 = arith.constant 1 : index
    %c0_28 = arith.constant 0 : index
    %c0_29 = arith.constant 0 : index
    %49 = vector.load %arg7[%48, %c1_27, %c0_28, %c0_29] : memref<2x10x24x128xf32, #tpu.memory_space<vmem>>, vector<1x1x24x128xf32>
    %50 = vector.shape_cast %49 : vector<1x1x24x128xf32> to vector<24x128xf32>
    %51 = vector.extract_strided_slice %50 {offsets = [0, 0], sizes = [16, 128], strides = [1, 1]} : vector<24x128xf32> to vector<16x128xf32>
    %52 = vector.broadcast %27 : vector<1x128xf32> to vector<16x128xf32>
    %53 = arith.mulf %51, %52 : vector<16x128xf32>
    %54 = arith.addf %47, %53 : vector<16x128xf32>
    %55 = vector.extract_strided_slice %50 {offsets = [1, 0], sizes = [16, 128], strides = [1, 1]} : vector<24x128xf32> to vector<16x128xf32>
    %56 = vector.broadcast %28 : vector<1x128xf32> to vector<16x128xf32>
    %57 = arith.mulf %55, %56 : vector<16x128xf32>
    %58 = arith.addf %54, %57 : vector<16x128xf32>
    %59 = vector.extract_strided_slice %50 {offsets = [2, 0], sizes = [16, 128], strides = [1, 1]} : vector<24x128xf32> to vector<16x128xf32>
    %60 = vector.broadcast %29 : vector<1x128xf32> to vector<16x128xf32>
    %61 = arith.mulf %59, %60 : vector<16x128xf32>
    %62 = arith.addf %58, %61 : vector<16x128xf32>
    %63 = arith.index_cast %9 : i32 to index
    %c2_30 = arith.constant 2 : index
    %c0_31 = arith.constant 0 : index
    %c0_32 = arith.constant 0 : index
    %64 = vector.load %arg7[%63, %c2_30, %c0_31, %c0_32] : memref<2x10x24x128xf32, #tpu.memory_space<vmem>>, vector<1x1x24x128xf32>
    %65 = vector.shape_cast %64 : vector<1x1x24x128xf32> to vector<24x128xf32>
    %66 = vector.extract_strided_slice %65 {offsets = [0, 0], sizes = [16, 128], strides = [1, 1]} : vector<24x128xf32> to vector<16x128xf32>
    %67 = vector.broadcast %30 : vector<1x128xf32> to vector<16x128xf32>
    %68 = arith.mulf %66, %67 : vector<16x128xf32>
    %69 = arith.addf %62, %68 : vector<16x128xf32>
    %70 = vector.extract_strided_slice %65 {offsets = [1, 0], sizes = [16, 128], strides = [1, 1]} : vector<24x128xf32> to vector<16x128xf32>
    %71 = vector.broadcast %31 : vector<1x128xf32> to vector<16x128xf32>
    %72 = arith.mulf %70, %71 : vector<16x128xf32>
    %73 = arith.addf %69, %72 : vector<16x128xf32>
    %74 = vector.extract_strided_slice %65 {offsets = [2, 0], sizes = [16, 128], strides = [1, 1]} : vector<24x128xf32> to vector<16x128xf32>
    %75 = vector.broadcast %32 : vector<1x128xf32> to vector<16x128xf32>
    %76 = arith.mulf %74, %75 : vector<16x128xf32>
    %77 = arith.addf %73, %76 : vector<16x128xf32>
    %78 = vector.broadcast %33 : vector<1x128xf32> to vector<16x128xf32>
    %79 = arith.addf %77, %78 : vector<16x128xf32>
    %c0_33 = arith.constant 0 : index
    %c0_34 = arith.constant 0 : index
    %c0_35 = arith.constant 0 : index
    %c0_36 = arith.constant 0 : index
    %80 = vector.load %arg6[%c0_33, %c0_34, %c0_35, %c0_36] : memref<1x8x16x128xf32, #tpu.memory_space<vmem>>, vector<1x1x16x128xf32>
    %81 = vector.shape_cast %80 : vector<1x1x16x128xf32> to vector<16x128xf32>
    %82 = vector.shape_cast %79 : vector<16x128xf32> to vector<1x1x16x128xf32>
    tpu.vector_store %arg6[%c0_33, %c0_34, %c0_35, %c0_36], %82 {strides = array<i32>} : memref<1x8x16x128xf32, #tpu.memory_space<vmem>>, vector<1x1x16x128xf32>,
    %83 = arith.index_cast %9 : i32 to index
    %c1_37 = arith.constant 1 : index
    %c0_38 = arith.constant 0 : index
    %c0_39 = arith.constant 0 : index
    %84 = vector.load %arg7[%83, %c1_37, %c0_38, %c0_39] : memref<2x10x24x128xf32, #tpu.memory_space<vmem>>, vector<1x1x24x128xf32>
    %85 = vector.shape_cast %84 : vector<1x1x24x128xf32> to vector<24x128xf32>
    %86 = vector.extract_strided_slice %85 {offsets = [0, 0], sizes = [16, 128], strides = [1, 1]} : vector<24x128xf32> to vector<16x128xf32>
    %87 = vector.broadcast %24 : vector<1x128xf32> to vector<16x128xf32>
    %88 = arith.mulf %86, %87 : vector<16x128xf32>
    %89 = vector.extract_strided_slice %85 {offsets = [1, 0], sizes = [16, 128], strides = [1, 1]} : vector<24x128xf32> to vector<16x128xf32>
    %90 = vector.broadcast %25 : vector<1x128xf32> to vector<16x128xf32>
    %91 = arith.mulf %89, %90 : vector<16x128xf32>
    %92 = arith.addf %88, %91 : vector<16x128xf32>
    %93 = vector.extract_strided_slice %85 {offsets = [2, 0], sizes = [16, 128], strides = [1, 1]} : vector<24x128xf32> to vector<16x128xf32>
    %94 = vector.broadcast %26 : vector<1x128xf32> to vector<16x128xf32>
    %95 = arith.mulf %93, %94 : vector<16x128xf32>
    %96 = arith.addf %92, %95 : vector<16x128xf32>
    %97 = arith.index_cast %9 : i32 to index
    %c2_40 = arith.constant 2 : index
    %c0_41 = arith.constant 0 : index
    %c0_42 = arith.constant 0 : index
    %98 = vector.load %arg7[%97, %c2_40, %c0_41, %c0_42] : memref<2x10x24x128xf32, #tpu.memory_space<vmem>>, vector<1x1x24x128xf32>
    %99 = vector.shape_cast %98 : vector<1x1x24x128xf32> to vector<24x128xf32>
    %100 = vector.extract_strided_slice %99 {offsets = [0, 0], sizes = [16, 128], strides = [1, 1]} : vector<24x128xf32> to vector<16x128xf32>
    %101 = vector.broadcast %27 : vector<1x128xf32> to vector<16x128xf32>
    %102 = arith.mulf %100, %101 : vector<16x128xf32>
    %103 = arith.addf %96, %102 : vector<16x128xf32>
    %104 = vector.extract_strided_slice %99 {offsets = [1, 0], sizes = [16, 128], strides = [1, 1]} : vector<24x128xf32> to vector<16x128xf32>
    %105 = vector.broadcast %28 : vector<1x128xf32> to vector<16x128xf32>
    %106 = arith.mulf %104, %105 : vector<16x128xf32>
    %107 = arith.addf %103, %106 : vector<16x128xf32>
    %108 = vector.extract_strided_slice %99 {offsets = [2, 0], sizes = [16, 128], strides = [1, 1]} : vector<24x128xf32> to vector<16x128xf32>
    %109 = vector.broadcast %29 : vector<1x128xf32> to vector<16x128xf32>
    %110 = arith.mulf %108, %109 : vector<16x128xf32>
    %111 = arith.addf %107, %110 : vector<16x128xf32>
    %112 = arith.index_cast %9 : i32 to index
    %c3_43 = arith.constant 3 : index
    %c0_44 = arith.constant 0 : index
    %c0_45 = arith.constant 0 : index
    %113 = vector.load %arg7[%112, %c3_43, %c0_44, %c0_45] : memref<2x10x24x128xf32, #tpu.memory_space<vmem>>, vector<1x1x24x128xf32>
    %114 = vector.shape_cast %113 : vector<1x1x24x128xf32> to vector<24x128xf32>
    %115 = vector.extract_strided_slice %114 {offsets = [0, 0], sizes = [16, 128], strides = [1, 1]} : vector<24x128xf32> to vector<16x128xf32>
    %116 = vector.broadcast %30 : vector<1x128xf32> to vector<16x128xf32>
    %117 = arith.mulf %115, %116 : vector<16x128xf32>
    %118 = arith.addf %111, %117 : vector<16x128xf32>
    %119 = vector.extract_strided_slice %114 {offsets = [1, 0], sizes = [16, 128], strides = [1, 1]} : vector<24x128xf32> to vector<16x128xf32>
    %120 = vector.broadcast %31 : vector<1x128xf32> to vector<16x128xf32>
    %121 = arith.mulf %119, %120 : vector<16x128xf32>
    %122 = arith.addf %118, %121 : vector<16x128xf32>
    %123 = vector.extract_strided_slice %114 {offsets = [2, 0], sizes = [16, 128], strides = [1, 1]} : vector<24x128xf32> to vector<16x128xf32>
    %124 = vector.broadcast %32 : vector<1x128xf32> to vector<16x128xf32>
    %125 = arith.mulf %123, %124 : vector<16x128xf32>
    %126 = arith.addf %122, %125 : vector<16x128xf32>
    %127 = vector.broadcast %33 : vector<1x128xf32> to vector<16x128xf32>
    %128 = arith.addf %126, %127 : vector<16x128xf32>
    %c0_46 = arith.constant 0 : index
    %c1_47 = arith.constant 1 : index
    %c0_48 = arith.constant 0 : index
    %c0_49 = arith.constant 0 : index
    %129 = vector.load %arg6[%c0_46, %c1_47, %c0_48, %c0_49] : memref<1x8x16x128xf32, #tpu.memory_space<vmem>>, vector<1x1x16x128xf32>
    %130 = vector.shape_cast %129 : vector<1x1x16x128xf32> to vector<16x128xf32>
    %131 = vector.shape_cast %128 : vector<16x128xf32> to vector<1x1x16x128xf32>
    tpu.vector_store %arg6[%c0_46, %c1_47, %c0_48, %c0_49], %131 {strides = array<i32>} : memref<1x8x16x128xf32, #tpu.memory_space<vmem>>, vector<1x1x16x128xf32>,
    %132 = arith.index_cast %9 : i32 to index
    %c2_50 = arith.constant 2 : index
    %c0_51 = arith.constant 0 : index
    %c0_52 = arith.constant 0 : index
    %133 = vector.load %arg7[%132, %c2_50, %c0_51, %c0_52] : memref<2x10x24x128xf32, #tpu.memory_space<vmem>>, vector<1x1x24x128xf32>
    %134 = vector.shape_cast %133 : vector<1x1x24x128xf32> to vector<24x128xf32>
    %135 = vector.extract_strided_slice %134 {offsets = [0, 0], sizes = [16, 128], strides = [1, 1]} : vector<24x128xf32> to vector<16x128xf32>
    %136 = vector.broadcast %24 : vector<1x128xf32> to vector<16x128xf32>
    %137 = arith.mulf %135, %136 : vector<16x128xf32>
    %138 = vector.extract_strided_slice %134 {offsets = [1, 0], sizes = [16, 128], strides = [1, 1]} : vector<24x128xf32> to vector<16x128xf32>
    %139 = vector.broadcast %25 : vector<1x128xf32> to vector<16x128xf32>
    %140 = arith.mulf %138, %139 : vector<16x128xf32>
    %141 = arith.addf %137, %140 : vector<16x128xf32>
    %142 = vector.extract_strided_slice %134 {offsets = [2, 0], sizes = [16, 128], strides = [1, 1]} : vector<24x128xf32> to vector<16x128xf32>
    %143 = vector.broadcast %26 : vector<1x128xf32> to vector<16x128xf32>
    %144 = arith.mulf %142, %143 : vector<16x128xf32>
    %145 = arith.addf %141, %144 : vector<16x128xf32>
    %146 = arith.index_cast %9 : i32 to index
    %c3_53 = arith.constant 3 : index
    %c0_54 = arith.constant 0 : index
    %c0_55 = arith.constant 0 : index
    %147 = vector.load %arg7[%146, %c3_53, %c0_54, %c0_55] : memref<2x10x24x128xf32, #tpu.memory_space<vmem>>, vector<1x1x24x128xf32>
    %148 = vector.shape_cast %147 : vector<1x1x24x128xf32> to vector<24x128xf32>
    %149 = vector.extract_strided_slice %148 {offsets = [0, 0], sizes = [16, 128], strides = [1, 1]} : vector<24x128xf32> to vector<16x128xf32>
    %150 = vector.broadcast %27 : vector<1x128xf32> to vector<16x128xf32>
    %151 = arith.mulf %149, %150 : vector<16x128xf32>
    %152 = arith.addf %145, %151 : vector<16x128xf32>
    %153 = vector.extract_strided_slice %148 {offsets = [1, 0], sizes = [16, 128], strides = [1, 1]} : vector<24x128xf32> to vector<16x128xf32>
    %154 = vector.broadcast %28 : vector<1x128xf32> to vector<16x128xf32>
    %155 = arith.mulf %153, %154 : vector<16x128xf32>
    %156 = arith.addf %152, %155 : vector<16x128xf32>
    %157 = vector.extract_strided_slice %148 {offsets = [2, 0], sizes = [16, 128], strides = [1, 1]} : vector<24x128xf32> to vector<16x128xf32>
    %158 = vector.broadcast %29 : vector<1x128xf32> to vector<16x128xf32>
    %159 = arith.mulf %157, %158 : vector<16x128xf32>
    %160 = arith.addf %156, %159 : vector<16x128xf32>
    %161 = arith.index_cast %9 : i32 to index
    %c4_56 = arith.constant 4 : index
    %c0_57 = arith.constant 0 : index
    %c0_58 = arith.constant 0 : index
    %162 = vector.load %arg7[%161, %c4_56, %c0_57, %c0_58] : memref<2x10x24x128xf32, #tpu.memory_space<vmem>>, vector<1x1x24x128xf32>
    %163 = vector.shape_cast %162 : vector<1x1x24x128xf32> to vector<24x128xf32>
    %164 = vector.extract_strided_slice %163 {offsets = [0, 0], sizes = [16, 128], strides = [1, 1]} : vector<24x128xf32> to vector<16x128xf32>
    %165 = vector.broadcast %30 : vector<1x128xf32> to vector<16x128xf32>
    %166 = arith.mulf %164, %165 : vector<16x128xf32>
    %167 = arith.addf %160, %166 : vector<16x128xf32>
    %168 = vector.extract_strided_slice %163 {offsets = [1, 0], sizes = [16, 128], strides = [1, 1]} : vector<24x128xf32> to vector<16x128xf32>
    %169 = vector.broadcast %31 : vector<1x128xf32> to vector<16x128xf32>
    %170 = arith.mulf %168, %169 : vector<16x128xf32>
    %171 = arith.addf %167, %170 : vector<16x128xf32>
    %172 = vector.extract_strided_slice %163 {offsets = [2, 0], sizes = [16, 128], strides = [1, 1]} : vector<24x128xf32> to vector<16x128xf32>
    %173 = vector.broadcast %32 : vector<1x128xf32> to vector<16x128xf32>
    %174 = arith.mulf %172, %173 : vector<16x128xf32>
    %175 = arith.addf %171, %174 : vector<16x128xf32>
    %176 = vector.broadcast %33 : vector<1x128xf32> to vector<16x128xf32>
    %177 = arith.addf %175, %176 : vector<16x128xf32>
    %c0_59 = arith.constant 0 : index
    %c2_60 = arith.constant 2 : index
    %c0_61 = arith.constant 0 : index
    %c0_62 = arith.constant 0 : index
    %178 = vector.load %arg6[%c0_59, %c2_60, %c0_61, %c0_62] : memref<1x8x16x128xf32, #tpu.memory_space<vmem>>, vector<1x1x16x128xf32>
    %179 = vector.shape_cast %178 : vector<1x1x16x128xf32> to vector<16x128xf32>
    %180 = vector.shape_cast %177 : vector<16x128xf32> to vector<1x1x16x128xf32>
    tpu.vector_store %arg6[%c0_59, %c2_60, %c0_61, %c0_62], %180 {strides = array<i32>} : memref<1x8x16x128xf32, #tpu.memory_space<vmem>>, vector<1x1x16x128xf32>,
    %181 = arith.index_cast %9 : i32 to index
    %c3_63 = arith.constant 3 : index
    %c0_64 = arith.constant 0 : index
    %c0_65 = arith.constant 0 : index
    %182 = vector.load %arg7[%181, %c3_63, %c0_64, %c0_65] : memref<2x10x24x128xf32, #tpu.memory_space<vmem>>, vector<1x1x24x128xf32>
    %183 = vector.shape_cast %182 : vector<1x1x24x128xf32> to vector<24x128xf32>
    %184 = vector.extract_strided_slice %183 {offsets = [0, 0], sizes = [16, 128], strides = [1, 1]} : vector<24x128xf32> to vector<16x128xf32>
    %185 = vector.broadcast %24 : vector<1x128xf32> to vector<16x128xf32>
    %186 = arith.mulf %184, %185 : vector<16x128xf32>
    %187 = vector.extract_strided_slice %183 {offsets = [1, 0], sizes = [16, 128], strides = [1, 1]} : vector<24x128xf32> to vector<16x128xf32>
    %188 = vector.broadcast %25 : vector<1x128xf32> to vector<16x128xf32>
    %189 = arith.mulf %187, %188 : vector<16x128xf32>
    %190 = arith.addf %186, %189 : vector<16x128xf32>
    %191 = vector.extract_strided_slice %183 {offsets = [2, 0], sizes = [16, 128], strides = [1, 1]} : vector<24x128xf32> to vector<16x128xf32>
    %192 = vector.broadcast %26 : vector<1x128xf32> to vector<16x128xf32>
    %193 = arith.mulf %191, %192 : vector<16x128xf32>
    %194 = arith.addf %190, %193 : vector<16x128xf32>
    %195 = arith.index_cast %9 : i32 to index
    %c4_66 = arith.constant 4 : index
    %c0_67 = arith.constant 0 : index
    %c0_68 = arith.constant 0 : index
    %196 = vector.load %arg7[%195, %c4_66, %c0_67, %c0_68] : memref<2x10x24x128xf32, #tpu.memory_space<vmem>>, vector<1x1x24x128xf32>
    %197 = vector.shape_cast %196 : vector<1x1x24x128xf32> to vector<24x128xf32>
    %198 = vector.extract_strided_slice %197 {offsets = [0, 0], sizes = [16, 128], strides = [1, 1]} : vector<24x128xf32> to vector<16x128xf32>
    %199 = vector.broadcast %27 : vector<1x128xf32> to vector<16x128xf32>
    %200 = arith.mulf %198, %199 : vector<16x128xf32>
    %201 = arith.addf %194, %200 : vector<16x128xf32>
    %202 = vector.extract_strided_slice %197 {offsets = [1, 0], sizes = [16, 128], strides = [1, 1]} : vector<24x128xf32> to vector<16x128xf32>
    %203 = vector.broadcast %28 : vector<1x128xf32> to vector<16x128xf32>
    %204 = arith.mulf %202, %203 : vector<16x128xf32>
    %205 = arith.addf %201, %204 : vector<16x128xf32>
    %206 = vector.extract_strided_slice %197 {offsets = [2, 0], sizes = [16, 128], strides = [1, 1]} : vector<24x128xf32> to vector<16x128xf32>
    %207 = vector.broadcast %29 : vector<1x128xf32> to vector<16x128xf32>
    %208 = arith.mulf %206, %207 : vector<16x128xf32>
    %209 = arith.addf %205, %208 : vector<16x128xf32>
    %210 = arith.index_cast %9 : i32 to index
    %c5_69 = arith.constant 5 : index
    %c0_70 = arith.constant 0 : index
    %c0_71 = arith.constant 0 : index
    %211 = vector.load %arg7[%210, %c5_69, %c0_70, %c0_71] : memref<2x10x24x128xf32, #tpu.memory_space<vmem>>, vector<1x1x24x128xf32>
    %212 = vector.shape_cast %211 : vector<1x1x24x128xf32> to vector<24x128xf32>
    %213 = vector.extract_strided_slice %212 {offsets = [0, 0], sizes = [16, 128], strides = [1, 1]} : vector<24x128xf32> to vector<16x128xf32>
    %214 = vector.broadcast %30 : vector<1x128xf32> to vector<16x128xf32>
    %215 = arith.mulf %213, %214 : vector<16x128xf32>
    %216 = arith.addf %209, %215 : vector<16x128xf32>
    %217 = vector.extract_strided_slice %212 {offsets = [1, 0], sizes = [16, 128], strides = [1, 1]} : vector<24x128xf32> to vector<16x128xf32>
    %218 = vector.broadcast %31 : vector<1x128xf32> to vector<16x128xf32>
    %219 = arith.mulf %217, %218 : vector<16x128xf32>
    %220 = arith.addf %216, %219 : vector<16x128xf32>
    %221 = vector.extract_strided_slice %212 {offsets = [2, 0], sizes = [16, 128], strides = [1, 1]} : vector<24x128xf32> to vector<16x128xf32>
    %222 = vector.broadcast %32 : vector<1x128xf32> to vector<16x128xf32>
    %223 = arith.mulf %221, %222 : vector<16x128xf32>
    %224 = arith.addf %220, %223 : vector<16x128xf32>
    %225 = vector.broadcast %33 : vector<1x128xf32> to vector<16x128xf32>
    %226 = arith.addf %224, %225 : vector<16x128xf32>
    %c0_72 = arith.constant 0 : index
    %c3_73 = arith.constant 3 : index
    %c0_74 = arith.constant 0 : index
    %c0_75 = arith.constant 0 : index
    %227 = vector.load %arg6[%c0_72, %c3_73, %c0_74, %c0_75] : memref<1x8x16x128xf32, #tpu.memory_space<vmem>>, vector<1x1x16x128xf32>
    %228 = vector.shape_cast %227 : vector<1x1x16x128xf32> to vector<16x128xf32>
    %229 = vector.shape_cast %226 : vector<16x128xf32> to vector<1x1x16x128xf32>
    tpu.vector_store %arg6[%c0_72, %c3_73, %c0_74, %c0_75], %229 {strides = array<i32>} : memref<1x8x16x128xf32, #tpu.memory_space<vmem>>, vector<1x1x16x128xf32>,
    %230 = arith.index_cast %9 : i32 to index
    %c4_76 = arith.constant 4 : index
    %c0_77 = arith.constant 0 : index
    %c0_78 = arith.constant 0 : index
    %231 = vector.load %arg7[%230, %c4_76, %c0_77, %c0_78] : memref<2x10x24x128xf32, #tpu.memory_space<vmem>>, vector<1x1x24x128xf32>
    %232 = vector.shape_cast %231 : vector<1x1x24x128xf32> to vector<24x128xf32>
    %233 = vector.extract_strided_slice %232 {offsets = [0, 0], sizes = [16, 128], strides = [1, 1]} : vector<24x128xf32> to vector<16x128xf32>
    %234 = vector.broadcast %24 : vector<1x128xf32> to vector<16x128xf32>
    %235 = arith.mulf %233, %234 : vector<16x128xf32>
    %236 = vector.extract_strided_slice %232 {offsets = [1, 0], sizes = [16, 128], strides = [1, 1]} : vector<24x128xf32> to vector<16x128xf32>
    %237 = vector.broadcast %25 : vector<1x128xf32> to vector<16x128xf32>
    %238 = arith.mulf %236, %237 : vector<16x128xf32>
    %239 = arith.addf %235, %238 : vector<16x128xf32>
    %240 = vector.extract_strided_slice %232 {offsets = [2, 0], sizes = [16, 128], strides = [1, 1]} : vector<24x128xf32> to vector<16x128xf32>
    %241 = vector.broadcast %26 : vector<1x128xf32> to vector<16x128xf32>
    %242 = arith.mulf %240, %241 : vector<16x128xf32>
    %243 = arith.addf %239, %242 : vector<16x128xf32>
    %244 = arith.index_cast %9 : i32 to index
    %c5_79 = arith.constant 5 : index
    %c0_80 = arith.constant 0 : index
    %c0_81 = arith.constant 0 : index
    %245 = vector.load %arg7[%244, %c5_79, %c0_80, %c0_81] : memref<2x10x24x128xf32, #tpu.memory_space<vmem>>, vector<1x1x24x128xf32>
    %246 = vector.shape_cast %245 : vector<1x1x24x128xf32> to vector<24x128xf32>
    %247 = vector.extract_strided_slice %246 {offsets = [0, 0], sizes = [16, 128], strides = [1, 1]} : vector<24x128xf32> to vector<16x128xf32>
    %248 = vector.broadcast %27 : vector<1x128xf32> to vector<16x128xf32>
    %249 = arith.mulf %247, %248 : vector<16x128xf32>
    %250 = arith.addf %243, %249 : vector<16x128xf32>
    %251 = vector.extract_strided_slice %246 {offsets = [1, 0], sizes = [16, 128], strides = [1, 1]} : vector<24x128xf32> to vector<16x128xf32>
    %252 = vector.broadcast %28 : vector<1x128xf32> to vector<16x128xf32>
    %253 = arith.mulf %251, %252 : vector<16x128xf32>
    %254 = arith.addf %250, %253 : vector<16x128xf32>
    %255 = vector.extract_strided_slice %246 {offsets = [2, 0], sizes = [16, 128], strides = [1, 1]} : vector<24x128xf32> to vector<16x128xf32>
    %256 = vector.broadcast %29 : vector<1x128xf32> to vector<16x128xf32>
    %257 = arith.mulf %255, %256 : vector<16x128xf32>
    %258 = arith.addf %254, %257 : vector<16x128xf32>
    %259 = arith.index_cast %9 : i32 to index
    %c6_82 = arith.constant 6 : index
    %c0_83 = arith.constant 0 : index
    %c0_84 = arith.constant 0 : index
    %260 = vector.load %arg7[%259, %c6_82, %c0_83, %c0_84] : memref<2x10x24x128xf32, #tpu.memory_space<vmem>>, vector<1x1x24x128xf32>
    %261 = vector.shape_cast %260 : vector<1x1x24x128xf32> to vector<24x128xf32>
    %262 = vector.extract_strided_slice %261 {offsets = [0, 0], sizes = [16, 128], strides = [1, 1]} : vector<24x128xf32> to vector<16x128xf32>
    %263 = vector.broadcast %30 : vector<1x128xf32> to vector<16x128xf32>
    %264 = arith.mulf %262, %263 : vector<16x128xf32>
    %265 = arith.addf %258, %264 : vector<16x128xf32>
    %266 = vector.extract_strided_slice %261 {offsets = [1, 0], sizes = [16, 128], strides = [1, 1]} : vector<24x128xf32> to vector<16x128xf32>
    %267 = vector.broadcast %31 : vector<1x128xf32> to vector<16x128xf32>
    %268 = arith.mulf %266, %267 : vector<16x128xf32>
    %269 = arith.addf %265, %268 : vector<16x128xf32>
    %270 = vector.extract_strided_slice %261 {offsets = [2, 0], sizes = [16, 128], strides = [1, 1]} : vector<24x128xf32> to vector<16x128xf32>
    %271 = vector.broadcast %32 : vector<1x128xf32> to vector<16x128xf32>
    %272 = arith.mulf %270, %271 : vector<16x128xf32>
    %273 = arith.addf %269, %272 : vector<16x128xf32>
    %274 = vector.broadcast %33 : vector<1x128xf32> to vector<16x128xf32>
    %275 = arith.addf %273, %274 : vector<16x128xf32>
    %c0_85 = arith.constant 0 : index
    %c4_86 = arith.constant 4 : index
    %c0_87 = arith.constant 0 : index
    %c0_88 = arith.constant 0 : index
    %276 = vector.load %arg6[%c0_85, %c4_86, %c0_87, %c0_88] : memref<1x8x16x128xf32, #tpu.memory_space<vmem>>, vector<1x1x16x128xf32>
    %277 = vector.shape_cast %276 : vector<1x1x16x128xf32> to vector<16x128xf32>
    %278 = vector.shape_cast %275 : vector<16x128xf32> to vector<1x1x16x128xf32>
    tpu.vector_store %arg6[%c0_85, %c4_86, %c0_87, %c0_88], %278 {strides = array<i32>} : memref<1x8x16x128xf32, #tpu.memory_space<vmem>>, vector<1x1x16x128xf32>,
    %279 = arith.index_cast %9 : i32 to index
    %c5_89 = arith.constant 5 : index
    %c0_90 = arith.constant 0 : index
    %c0_91 = arith.constant 0 : index
    %280 = vector.load %arg7[%279, %c5_89, %c0_90, %c0_91] : memref<2x10x24x128xf32, #tpu.memory_space<vmem>>, vector<1x1x24x128xf32>
    %281 = vector.shape_cast %280 : vector<1x1x24x128xf32> to vector<24x128xf32>
    %282 = vector.extract_strided_slice %281 {offsets = [0, 0], sizes = [16, 128], strides = [1, 1]} : vector<24x128xf32> to vector<16x128xf32>
    %283 = vector.broadcast %24 : vector<1x128xf32> to vector<16x128xf32>
    %284 = arith.mulf %282, %283 : vector<16x128xf32>
    %285 = vector.extract_strided_slice %281 {offsets = [1, 0], sizes = [16, 128], strides = [1, 1]} : vector<24x128xf32> to vector<16x128xf32>
    %286 = vector.broadcast %25 : vector<1x128xf32> to vector<16x128xf32>
    %287 = arith.mulf %285, %286 : vector<16x128xf32>
    %288 = arith.addf %284, %287 : vector<16x128xf32>
    %289 = vector.extract_strided_slice %281 {offsets = [2, 0], sizes = [16, 128], strides = [1, 1]} : vector<24x128xf32> to vector<16x128xf32>
    %290 = vector.broadcast %26 : vector<1x128xf32> to vector<16x128xf32>
    %291 = arith.mulf %289, %290 : vector<16x128xf32>
    %292 = arith.addf %288, %291 : vector<16x128xf32>
    %293 = arith.index_cast %9 : i32 to index
    %c6_92 = arith.constant 6 : index
    %c0_93 = arith.constant 0 : index
    %c0_94 = arith.constant 0 : index
    %294 = vector.load %arg7[%293, %c6_92, %c0_93, %c0_94] : memref<2x10x24x128xf32, #tpu.memory_space<vmem>>, vector<1x1x24x128xf32>
    %295 = vector.shape_cast %294 : vector<1x1x24x128xf32> to vector<24x128xf32>
    %296 = vector.extract_strided_slice %295 {offsets = [0, 0], sizes = [16, 128], strides = [1, 1]} : vector<24x128xf32> to vector<16x128xf32>
    %297 = vector.broadcast %27 : vector<1x128xf32> to vector<16x128xf32>
    %298 = arith.mulf %296, %297 : vector<16x128xf32>
    %299 = arith.addf %292, %298 : vector<16x128xf32>
    %300 = vector.extract_strided_slice %295 {offsets = [1, 0], sizes = [16, 128], strides = [1, 1]} : vector<24x128xf32> to vector<16x128xf32>
    %301 = vector.broadcast %28 : vector<1x128xf32> to vector<16x128xf32>
    %302 = arith.mulf %300, %301 : vector<16x128xf32>
    %303 = arith.addf %299, %302 : vector<16x128xf32>
    %304 = vector.extract_strided_slice %295 {offsets = [2, 0], sizes = [16, 128], strides = [1, 1]} : vector<24x128xf32> to vector<16x128xf32>
    %305 = vector.broadcast %29 : vector<1x128xf32> to vector<16x128xf32>
    %306 = arith.mulf %304, %305 : vector<16x128xf32>
    %307 = arith.addf %303, %306 : vector<16x128xf32>
    %308 = arith.index_cast %9 : i32 to index
    %c7_95 = arith.constant 7 : index
    %c0_96 = arith.constant 0 : index
    %c0_97 = arith.constant 0 : index
    %309 = vector.load %arg7[%308, %c7_95, %c0_96, %c0_97] : memref<2x10x24x128xf32, #tpu.memory_space<vmem>>, vector<1x1x24x128xf32>
    %310 = vector.shape_cast %309 : vector<1x1x24x128xf32> to vector<24x128xf32>
    %311 = vector.extract_strided_slice %310 {offsets = [0, 0], sizes = [16, 128], strides = [1, 1]} : vector<24x128xf32> to vector<16x128xf32>
    %312 = vector.broadcast %30 : vector<1x128xf32> to vector<16x128xf32>
    %313 = arith.mulf %311, %312 : vector<16x128xf32>
    %314 = arith.addf %307, %313 : vector<16x128xf32>
    %315 = vector.extract_strided_slice %310 {offsets = [1, 0], sizes = [16, 128], strides = [1, 1]} : vector<24x128xf32> to vector<16x128xf32>
    %316 = vector.broadcast %31 : vector<1x128xf32> to vector<16x128xf32>
    %317 = arith.mulf %315, %316 : vector<16x128xf32>
    %318 = arith.addf %314, %317 : vector<16x128xf32>
    %319 = vector.extract_strided_slice %310 {offsets = [2, 0], sizes = [16, 128], strides = [1, 1]} : vector<24x128xf32> to vector<16x128xf32>
    %320 = vector.broadcast %32 : vector<1x128xf32> to vector<16x128xf32>
    %321 = arith.mulf %319, %320 : vector<16x128xf32>
    %322 = arith.addf %318, %321 : vector<16x128xf32>
    %323 = vector.broadcast %33 : vector<1x128xf32> to vector<16x128xf32>
    %324 = arith.addf %322, %323 : vector<16x128xf32>
    %c0_98 = arith.constant 0 : index
    %c5_99 = arith.constant 5 : index
    %c0_100 = arith.constant 0 : index
    %c0_101 = arith.constant 0 : index
    %325 = vector.load %arg6[%c0_98, %c5_99, %c0_100, %c0_101] : memref<1x8x16x128xf32, #tpu.memory_space<vmem>>, vector<1x1x16x128xf32>
    %326 = vector.shape_cast %325 : vector<1x1x16x128xf32> to vector<16x128xf32>
    %327 = vector.shape_cast %324 : vector<16x128xf32> to vector<1x1x16x128xf32>
    tpu.vector_store %arg6[%c0_98, %c5_99, %c0_100, %c0_101], %327 {strides = array<i32>} : memref<1x8x16x128xf32, #tpu.memory_space<vmem>>, vector<1x1x16x128xf32>,
    %328 = arith.index_cast %9 : i32 to index
    %c6_102 = arith.constant 6 : index
    %c0_103 = arith.constant 0 : index
    %c0_104 = arith.constant 0 : index
    %329 = vector.load %arg7[%328, %c6_102, %c0_103, %c0_104] : memref<2x10x24x128xf32, #tpu.memory_space<vmem>>, vector<1x1x24x128xf32>
    %330 = vector.shape_cast %329 : vector<1x1x24x128xf32> to vector<24x128xf32>
    %331 = vector.extract_strided_slice %330 {offsets = [0, 0], sizes = [16, 128], strides = [1, 1]} : vector<24x128xf32> to vector<16x128xf32>
    %332 = vector.broadcast %24 : vector<1x128xf32> to vector<16x128xf32>
    %333 = arith.mulf %331, %332 : vector<16x128xf32>
    %334 = vector.extract_strided_slice %330 {offsets = [1, 0], sizes = [16, 128], strides = [1, 1]} : vector<24x128xf32> to vector<16x128xf32>
    %335 = vector.broadcast %25 : vector<1x128xf32> to vector<16x128xf32>
    %336 = arith.mulf %334, %335 : vector<16x128xf32>
    %337 = arith.addf %333, %336 : vector<16x128xf32>
    %338 = vector.extract_strided_slice %330 {offsets = [2, 0], sizes = [16, 128], strides = [1, 1]} : vector<24x128xf32> to vector<16x128xf32>
    %339 = vector.broadcast %26 : vector<1x128xf32> to vector<16x128xf32>
    %340 = arith.mulf %338, %339 : vector<16x128xf32>
    %341 = arith.addf %337, %340 : vector<16x128xf32>
    %342 = arith.index_cast %9 : i32 to index
    %c7_105 = arith.constant 7 : index
    %c0_106 = arith.constant 0 : index
    %c0_107 = arith.constant 0 : index
    %343 = vector.load %arg7[%342, %c7_105, %c0_106, %c0_107] : memref<2x10x24x128xf32, #tpu.memory_space<vmem>>, vector<1x1x24x128xf32>
    %344 = vector.shape_cast %343 : vector<1x1x24x128xf32> to vector<24x128xf32>
    %345 = vector.extract_strided_slice %344 {offsets = [0, 0], sizes = [16, 128], strides = [1, 1]} : vector<24x128xf32> to vector<16x128xf32>
    %346 = vector.broadcast %27 : vector<1x128xf32> to vector<16x128xf32>
    %347 = arith.mulf %345, %346 : vector<16x128xf32>
    %348 = arith.addf %341, %347 : vector<16x128xf32>
    %349 = vector.extract_strided_slice %344 {offsets = [1, 0], sizes = [16, 128], strides = [1, 1]} : vector<24x128xf32> to vector<16x128xf32>
    %350 = vector.broadcast %28 : vector<1x128xf32> to vector<16x128xf32>
    %351 = arith.mulf %349, %350 : vector<16x128xf32>
    %352 = arith.addf %348, %351 : vector<16x128xf32>
    %353 = vector.extract_strided_slice %344 {offsets = [2, 0], sizes = [16, 128], strides = [1, 1]} : vector<24x128xf32> to vector<16x128xf32>
    %354 = vector.broadcast %29 : vector<1x128xf32> to vector<16x128xf32>
    %355 = arith.mulf %353, %354 : vector<16x128xf32>
    %356 = arith.addf %352, %355 : vector<16x128xf32>
    %357 = arith.index_cast %9 : i32 to index
    %c8_108 = arith.constant 8 : index
    %c0_109 = arith.constant 0 : index
    %c0_110 = arith.constant 0 : index
    %358 = vector.load %arg7[%357, %c8_108, %c0_109, %c0_110] : memref<2x10x24x128xf32, #tpu.memory_space<vmem>>, vector<1x1x24x128xf32>
    %359 = vector.shape_cast %358 : vector<1x1x24x128xf32> to vector<24x128xf32>
    %360 = vector.extract_strided_slice %359 {offsets = [0, 0], sizes = [16, 128], strides = [1, 1]} : vector<24x128xf32> to vector<16x128xf32>
    %361 = vector.broadcast %30 : vector<1x128xf32> to vector<16x128xf32>
    %362 = arith.mulf %360, %361 : vector<16x128xf32>
    %363 = arith.addf %356, %362 : vector<16x128xf32>
    %364 = vector.extract_strided_slice %359 {offsets = [1, 0], sizes = [16, 128], strides = [1, 1]} : vector<24x128xf32> to vector<16x128xf32>
    %365 = vector.broadcast %31 : vector<1x128xf32> to vector<16x128xf32>
    %366 = arith.mulf %364, %365 : vector<16x128xf32>
    %367 = arith.addf %363, %366 : vector<16x128xf32>
    %368 = vector.extract_strided_slice %359 {offsets = [2, 0], sizes = [16, 128], strides = [1, 1]} : vector<24x128xf32> to vector<16x128xf32>
    %369 = vector.broadcast %32 : vector<1x128xf32> to vector<16x128xf32>
    %370 = arith.mulf %368, %369 : vector<16x128xf32>
    %371 = arith.addf %367, %370 : vector<16x128xf32>
    %372 = vector.broadcast %33 : vector<1x128xf32> to vector<16x128xf32>
    %373 = arith.addf %371, %372 : vector<16x128xf32>
    %c0_111 = arith.constant 0 : index
    %c6_112 = arith.constant 6 : index
    %c0_113 = arith.constant 0 : index
    %c0_114 = arith.constant 0 : index
    %374 = vector.load %arg6[%c0_111, %c6_112, %c0_113, %c0_114] : memref<1x8x16x128xf32, #tpu.memory_space<vmem>>, vector<1x1x16x128xf32>
    %375 = vector.shape_cast %374 : vector<1x1x16x128xf32> to vector<16x128xf32>
    %376 = vector.shape_cast %373 : vector<16x128xf32> to vector<1x1x16x128xf32>
    tpu.vector_store %arg6[%c0_111, %c6_112, %c0_113, %c0_114], %376 {strides = array<i32>} : memref<1x8x16x128xf32, #tpu.memory_space<vmem>>, vector<1x1x16x128xf32>,
    %377 = arith.index_cast %9 : i32 to index
    %c7_115 = arith.constant 7 : index
    %c0_116 = arith.constant 0 : index
    %c0_117 = arith.constant 0 : index
    %378 = vector.load %arg7[%377, %c7_115, %c0_116, %c0_117] : memref<2x10x24x128xf32, #tpu.memory_space<vmem>>, vector<1x1x24x128xf32>
    %379 = vector.shape_cast %378 : vector<1x1x24x128xf32> to vector<24x128xf32>
    %380 = vector.extract_strided_slice %379 {offsets = [0, 0], sizes = [16, 128], strides = [1, 1]} : vector<24x128xf32> to vector<16x128xf32>
    %381 = vector.broadcast %24 : vector<1x128xf32> to vector<16x128xf32>
    %382 = arith.mulf %380, %381 : vector<16x128xf32>
    %383 = vector.extract_strided_slice %379 {offsets = [1, 0], sizes = [16, 128], strides = [1, 1]} : vector<24x128xf32> to vector<16x128xf32>
    %384 = vector.broadcast %25 : vector<1x128xf32> to vector<16x128xf32>
    %385 = arith.mulf %383, %384 : vector<16x128xf32>
    %386 = arith.addf %382, %385 : vector<16x128xf32>
    %387 = vector.extract_strided_slice %379 {offsets = [2, 0], sizes = [16, 128], strides = [1, 1]} : vector<24x128xf32> to vector<16x128xf32>
    %388 = vector.broadcast %26 : vector<1x128xf32> to vector<16x128xf32>
    %389 = arith.mulf %387, %388 : vector<16x128xf32>
    %390 = arith.addf %386, %389 : vector<16x128xf32>
    %391 = arith.index_cast %9 : i32 to index
    %c8_118 = arith.constant 8 : index
    %c0_119 = arith.constant 0 : index
    %c0_120 = arith.constant 0 : index
    %392 = vector.load %arg7[%391, %c8_118, %c0_119, %c0_120] : memref<2x10x24x128xf32, #tpu.memory_space<vmem>>, vector<1x1x24x128xf32>
    %393 = vector.shape_cast %392 : vector<1x1x24x128xf32> to vector<24x128xf32>
    %394 = vector.extract_strided_slice %393 {offsets = [0, 0], sizes = [16, 128], strides = [1, 1]} : vector<24x128xf32> to vector<16x128xf32>
    %395 = vector.broadcast %27 : vector<1x128xf32> to vector<16x128xf32>
    %396 = arith.mulf %394, %395 : vector<16x128xf32>
    %397 = arith.addf %390, %396 : vector<16x128xf32>
    %398 = vector.extract_strided_slice %393 {offsets = [1, 0], sizes = [16, 128], strides = [1, 1]} : vector<24x128xf32> to vector<16x128xf32>
    %399 = vector.broadcast %28 : vector<1x128xf32> to vector<16x128xf32>
    %400 = arith.mulf %398, %399 : vector<16x128xf32>
    %401 = arith.addf %397, %400 : vector<16x128xf32>
    %402 = vector.extract_strided_slice %393 {offsets = [2, 0], sizes = [16, 128], strides = [1, 1]} : vector<24x128xf32> to vector<16x128xf32>
    %403 = vector.broadcast %29 : vector<1x128xf32> to vector<16x128xf32>
    %404 = arith.mulf %402, %403 : vector<16x128xf32>
    %405 = arith.addf %401, %404 : vector<16x128xf32>
    %406 = arith.index_cast %9 : i32 to index
    %c9 = arith.constant 9 : index
    %c0_121 = arith.constant 0 : index
    %c0_122 = arith.constant 0 : index
    %407 = vector.load %arg7[%406, %c9, %c0_121, %c0_122] : memref<2x10x24x128xf32, #tpu.memory_space<vmem>>, vector<1x1x24x128xf32>
    %408 = vector.shape_cast %407 : vector<1x1x24x128xf32> to vector<24x128xf32>
    %409 = vector.extract_strided_slice %408 {offsets = [0, 0], sizes = [16, 128], strides = [1, 1]} : vector<24x128xf32> to vector<16x128xf32>
    %410 = vector.broadcast %30 : vector<1x128xf32> to vector<16x128xf32>
    %411 = arith.mulf %409, %410 : vector<16x128xf32>
    %412 = arith.addf %405, %411 : vector<16x128xf32>
    %413 = vector.extract_strided_slice %408 {offsets = [1, 0], sizes = [16, 128], strides = [1, 1]} : vector<24x128xf32> to vector<16x128xf32>
    %414 = vector.broadcast %31 : vector<1x128xf32> to vector<16x128xf32>
    %415 = arith.mulf %413, %414 : vector<16x128xf32>
    %416 = arith.addf %412, %415 : vector<16x128xf32>
    %417 = vector.extract_strided_slice %408 {offsets = [2, 0], sizes = [16, 128], strides = [1, 1]} : vector<24x128xf32> to vector<16x128xf32>
    %418 = vector.broadcast %32 : vector<1x128xf32> to vector<16x128xf32>
    %419 = arith.mulf %417, %418 : vector<16x128xf32>
    %420 = arith.addf %416, %419 : vector<16x128xf32>
    %421 = vector.broadcast %33 : vector<1x128xf32> to vector<16x128xf32>
    %422 = arith.addf %420, %421 : vector<16x128xf32>
    %c0_123 = arith.constant 0 : index
    %c7_124 = arith.constant 7 : index
    %c0_125 = arith.constant 0 : index
    %c0_126 = arith.constant 0 : index
    %423 = vector.load %arg6[%c0_123, %c7_124, %c0_125, %c0_126] : memref<1x8x16x128xf32, #tpu.memory_space<vmem>>, vector<1x1x16x128xf32>
    %424 = vector.shape_cast %423 : vector<1x1x16x128xf32> to vector<16x128xf32>
    %425 = vector.shape_cast %422 : vector<16x128xf32> to vector<1x1x16x128xf32>
    tpu.vector_store %arg6[%c0_123, %c7_124, %c0_125, %c0_126], %425 {strides = array<i32>} : memref<1x8x16x128xf32, #tpu.memory_space<vmem>>, vector<1x1x16x128xf32>,
    return
  }
  func.func @transform_1(%arg0: i32, %arg1: i32, %arg2: i32) -> (i32, i32) {
    %c0_i32 = arith.constant 0 : i32
    %c0_i32_0 = arith.constant 0 : i32
    return %c0_i32, %arg1 : i32, i32
  }
  func.func @transform_2(%arg0: i32, %arg1: i32, %arg2: i32) -> (i32, i32) {
    %c0_i32 = arith.constant 0 : i32
    %c0_i32_0 = arith.constant 0 : i32
    return %c0_i32, %arg1 : i32, i32
  }
  func.func @transform_3(%arg0: i32, %arg1: i32, %arg2: i32) -> (i32, i32, i32, i32) {
    %c0_i32 = arith.constant 0 : i32
    %c0_i32_0 = arith.constant 0 : i32
    return %arg0, %arg2, %c0_i32, %arg1 : i32, i32, i32, i32
  }
}

</mosaic_0001>

<llo_original>
// kernel: depthwise_conv2d.1
$region0: #{depthwise_conv2d.1}
  #allocation0 [shape = 'u32[]', space=smem, size = 0x4, offset = 0x4, fixed_abs, tag = 'smem constant byte address 0x4 - core index']
  #allocation1 [shape = 'u32[144,128]{1,0:T(1,128)}', space=vmem, size = 0x12000, scoped, tag = 'internal scratch']
  #allocation2 [shape = 'f32[2,10,24,128]{3,2,1,0:T(8,128)}', space=vmem, size = 0x3c000, scoped, tag = 'scratch operand']
  #allocation3 [shape = 's32[2]{0}', space=sflag, size = 0x8, scoped, tag = 'scratch operand']
  #allocation4 [shape = 's32[]', space=sflag, size = 0x4, offset = 0, fixed_abs, tag = 'sflag constant byte address 0x0 - dummy sync flag']
  #allocation5 [shape = 's32[]', space=sflag, size = 0x4, offset = 0, fixed_abs, tag = 'sflag constant byte address 0x0 - dummy sync flag']
  %s0 = inlined_call_operand.vmem [shape: f32[2,18,24,128], index: 0, kind: input, shape index: {}]
  %s1 = inlined_call_operand.vmem [shape: f32[9,128], index: 1, kind: input, shape index: {}]
  %s2 = inlined_call_operand.vmem [shape: f32[1,128], index: 2, kind: input, shape index: {}]
  %s3 = inlined_call_operand.vmem [shape: f32[2,16,16,128], index: 3, kind: output, shape index: {}]
  %s4 = sld [smem:[#allocation0]]
  $region117: #{depthwise_conv2d.1} parent=0
    _
  %s6 = ssub.s32 1, %s4
  %s7 = scalar_select 0, %s6, %s4
  loop: start=0, step=1, limit=6
  $region2: #{depthwise_conv2d.1} parent=0 // loop_pre_header
    _
  $region3: #{depthwise_conv2d.1} parent=0 // loop_header
    %s9 = sphi 0, %s13
    %p10 = scmp.ge.s32.totalorder %s9, 6
    %s16 = sphi 0, %s35
    %s17 = sphi 0, %s31
    %s18 = sphi 0, %s27
    %s19 = sphi 0, %s16
    %s20 = sphi 0, %s17
    %s21 = sphi 0, %s18
    %s22 = sphi 0, %s19
    %s23 = sphi 0, %s20
    %s24 = sphi 0, %s21
    %s38 = sphi 0, %s40
    %s41 = sphi 0, %s38
    %s42 = sphi 0, %s41
    %s58 = sphi 0, %s42
    %s64 = sphi 0, %s66
    %s67 = sphi 0, %s64
    %s68 = sphi 0, %s67
    %s84 = sphi 0, %s68
    %s94 = sphi 0, %s96
    %s97 = sphi 0, %s94
    %s98 = sphi 0, %s97
    %s114 = sphi 0, %s98
  $region4: #{depthwise_conv2d.1} parent=0 // loop_header_branch
    %12 = sbr.rel (%p10) target = $region8
  $region5: #{depthwise_conv2d.1} parent=0 // loop_body
    %s14 = ssub.s32 %s9, 1
    %s15 = ssub.s32 %s9, 2
    %s25 = sadd.s32 1, %s18
    %p26 = scmp.ge.s32.totalorder %s25, 2
    %s27 = scalar_select %p26, 0, %s25
    %s28 = sadd.s32 1, %s17
    %s29 = scalar_select %p26, %s28, %s17
    %p30 = scmp.ge.s32.totalorder %s29, 1
    %s31 = scalar_select %p30, 0, %s29
    %s32 = sadd.s32 1, %s16
    %s33 = scalar_select %p30, %s32, %s16
    %p34 = scmp.ge.s32.totalorder %s33, 2
    %s35 = scalar_select %p34, 0, %s33
    %s36 = ssub.s32 %s17, %s31
    %p37 = scmp.eq.s32.totalorder %s36, 0
    %s39 = sadd.s32 %s38, 1
    %s40 = scalar_select %p37, %s38, %s39
    %p43 = pneg %p37
    %p44 = scmp.eq.s32.totalorder %s9, 3
    %p45 = por %p43, %p44
    %p46 = scmp.ne.s32.totalorder %s38, %s41
    %p47 = scmp.eq.s32.totalorder %s9, 0
    %p48 = por %p46, %p47
    %p49 = scmp.ne.s32.totalorder %s38, %s41
    %p50 = scmp.eq.s32.totalorder %s14, 3
    %p51 = por %p49, %p50
    %p52 = scmp.ne.s32.totalorder %s41, %s42
    %p53 = scmp.eq.s32.totalorder %s14, 0
    %p54 = por %p52, %p53
    %p55 = scmp.ne.s32.totalorder %s41, %s42
    %p56 = scmp.eq.s32.totalorder %s15, 3
    %p57 = por %p55, %p56
    %p59 = scmp.ne.s32.totalorder %s42, %s58
    %p60 = scmp.eq.s32.totalorder %s15, 0
    %p61 = por %p59, %p60
    %s62 = ssub.s32 %s17, %s31
    %p63 = scmp.eq.s32.totalorder %s62, 0
    %s65 = sadd.s32 %s64, 1
    %s66 = scalar_select %p63, %s64, %s65
    %p69 = pneg %p63
    %p70 = scmp.eq.s32.totalorder %s9, 3
    %p71 = por %p69, %p70
    %p72 = scmp.ne.s32.totalorder %s64, %s67
    %p73 = scmp.eq.s32.totalorder %s9, 0
    %p74 = por %p72, %p73
    %p75 = scmp.ne.s32.totalorder %s64, %s67
    %p76 = scmp.eq.s32.totalorder %s14, 3
    %p77 = por %p75, %p76
    %p78 = scmp.ne.s32.totalorder %s67, %s68
    %p79 = scmp.eq.s32.totalorder %s14, 0
    %p80 = por %p78, %p79
    %p81 = scmp.ne.s32.totalorder %s67, %s68
    %p82 = scmp.eq.s32.totalorder %s15, 3
    %p83 = por %p81, %p82
    %p85 = scmp.ne.s32.totalorder %s68, %s84
    %p86 = scmp.eq.s32.totalorder %s15, 0
    %p87 = por %p85, %p86
    %s88 = ssub.s32 %s16, %s35
    %s89 = ssub.s32 %s18, %s27
    %s90 = sor.u32 %s88, %s89
    %s91 = ssub.s32 %s17, %s31
    %s92 = sor.u32 %s90, %s91
    %p93 = scmp.eq.s32.totalorder %s92, 0
    %s95 = sadd.s32 %s94, 1
    %s96 = scalar_select %p93, %s94, %s95
    %p99 = pneg %p93
    %p100 = scmp.eq.s32.totalorder %s9, 3
    %p101 = por %p99, %p100
    %p102 = scmp.ne.s32.totalorder %s94, %s97
    %p103 = scmp.eq.s32.totalorder %s9, 0
    %p104 = por %p102, %p103
    %p105 = scmp.ne.s32.totalorder %s94, %s97
    %p106 = scmp.eq.s32.totalorder %s14, 3
    %p107 = por %p105, %p106
    %p108 = scmp.ne.s32.totalorder %s97, %s98
    %p109 = scmp.eq.s32.totalorder %s14, 0
    %p110 = por %p108, %p109
    %p111 = scmp.ne.s32.totalorder %s97, %s98
    %p112 = scmp.eq.s32.totalorder %s15, 3
    %p113 = por %p111, %p112
    %p115 = scmp.ne.s32.totalorder %s98, %s114
    %p116 = scmp.eq.s32.totalorder %s15, 0
    %p117 = por %p115, %p116
    %p118 = scmp.le.s32.totalorder 1, %s9
    %p119 = scmp.lt.s32.totalorder %s9, 5
    %p120 = pnand %p118, %p119
    %p121 = pneg %p120
    // Predicated region
    $region9: #{depthwise_conv2d.1} parent=5 // pred_check
      _
    $region10: #{depthwise_conv2d.1} parent=5 // pred_check_branch
      %123 = sbr.rel (%p120) target = $region12
    $region11: #{depthwise_conv2d.1} parent=5 // pred_region
      %s124 = ssub.s32 %s9, 1
      // Predicated region
      $region13: #{depthwise_conv2d.1} parent=11 // pred_check
        %p125 = pneg %p54
      $region14: #{depthwise_conv2d.1} parent=11 // pred_check_branch
        %127 = sbr.rel (%p125) target = $region16
      $region15: #{depthwise_conv2d.1} parent=11 // pred_region
        %p128 = scmp.lt.s32.totalorder %s20, 0
        %s129 = scalar_select %p128, %s20, 0
        %s130 = smul.addr %s129, 8
        %s131 = scalar_lea.vmem %s1, %s130
      $region16: #{depthwise_conv2d.1} parent=11 // pred_fallthru
        _
      // Predicated region
      $region17: #{depthwise_conv2d.1} parent=11 // pred_check
        %p132 = pneg %p80
      $region18: #{depthwise_conv2d.1} parent=11 // pred_check_branch
        %134 = sbr.rel (%p132) target = $region20
      $region19: #{depthwise_conv2d.1} parent=11 // pred_region
        %p135 = scmp.lt.s32.totalorder %s20, 0
        %s136 = scalar_select %p135, %s20, 0
        %s137 = scalar_lea.vmem %s2, %s136
      $region20: #{depthwise_conv2d.1} parent=11 // pred_fallthru
        _
    $region12: #{depthwise_conv2d.1} parent=5 // pred_fallthru
      _
    %p138 = scmp.lt.s32.totalorder %s9, 4
    // Predicated region
    $region21: #{depthwise_conv2d.1} parent=5 // pred_check
      %p139 = pneg %p138
    $region22: #{depthwise_conv2d.1} parent=5 // pred_check_branch
      %141 = sbr.rel (%p139) target = $region24
    $region23: #{depthwise_conv2d.1} parent=5 // pred_region
      _
    $region24: #{depthwise_conv2d.1} parent=5 // pred_fallthru
      _
    %p142 = scmp.le.s32.totalorder 1, %s9
    %p143 = scmp.lt.s32.totalorder %s9, 5
    %p144 = pnand %p142, %p143
    %p145 = pneg %p144
    // Predicated region
    $region25: #{depthwise_conv2d.1} parent=5 // pred_check
      _
    $region26: #{depthwise_conv2d.1} parent=5 // pred_check_branch
      %147 = sbr.rel (%p144) target = $region28
    $region27: #{depthwise_conv2d.1} parent=5 // pred_region
      %s148 = ssub.s32 %s9, 1
      %p149 = scmp.lt.s32.totalorder %s20, 0
      %s150 = scalar_select %p149, %s20, 0
      %s151 = smul.addr %s150, 8
      %s152 = scalar_lea.vmem %s1, %s151
      %p153 = pneg %p54
      %p154 = pneg %p51
      %p155 = scmp.lt.s32.totalorder %s20, 0
      %s156 = scalar_select %p155, %s20, 0
      %s157 = scalar_lea.vmem %s2, %s156
      %p158 = pneg %p80
      %p159 = pneg %p77
      %p160 = pneg %p110
      %p161 = pneg %p107
      %s162 = smul.u32 8, %s21
      %p163 = scmp.lt.s32.totalorder %s19, 1
      %s164 = scalar_select %p163, %s19, 1
      %p165 = scmp.lt.s32.totalorder %s162, 15
      %s166 = scalar_select %p165, %s162, 15
      %p167 = scmp.lt.s32.totalorder %s20, 0
      %s168 = scalar_select %p167, %s20, 0
      %s169 = smul.addr %s166, 2
      %s170 = sadd.s32 %s168, %s169
      %s171 = smul.addr %s164, 32
      %s172 = sadd.s32 %s170, %s171
      %s173 = smul.addr %s172, 8
      %s174 = scalar_lea.vmem %s3, %s173
      %p175 = scmp.lt.s32.totalorder %s20, 0
      %s176 = scalar_select %p175, %s20, 0
      %s177 = smul.addr %s176, 8
      %s178 = scalar_lea.vmem %s1, %s177
      %p179 = scmp.lt.s32.totalorder %s20, 0
      %s180 = scalar_select %p179, %s20, 0
      %s181 = scalar_lea.vmem %s2, %s180
      %s182 = smul.u32 8, %s21
      %p183 = scmp.lt.s32.totalorder %s19, 1
      %s184 = scalar_select %p183, %s19, 1
      %p185 = scmp.lt.s32.totalorder %s182, 15
      %s186 = scalar_select %p185, %s182, 15
      %p187 = scmp.lt.s32.totalorder %s20, 0
      %s188 = scalar_select %p187, %s20, 0
      %s189 = smul.addr %s186, 2
      %s190 = sadd.s32 %s188, %s189
      %s191 = smul.addr %s184, 32
      %s192 = sadd.s32 %s190, %s191
      %s193 = smul.addr %s192, 8
      %s194 = scalar_lea.vmem %s3, %s193
      %s195 = smul.u32 8, %s21
      %p196 = scmp.lt.s32.totalorder %s21, 0
      %s197 = ssub.s32 0, %s21
      %s198 = scalar_select %p196, %s197, %s21
      %s199 = sand.u32 %s198, 1
      %s200 = ssub.s32 0, %s199
      %s201 = scalar_select %p196, %s200, %s199
      %p202 = scmp.ne.s32.totalorder %s201, 0
      %p203 = scmp.lt.s32.totalorder %s201, 0
      %p204 = pnand %p203, %p202
      %p205 = pneg %p204
      %s206 = sadd.s32 %s201, 2
      %s207 = scalar_select %p205, %s206, %s201
      %p208 = scmp.eq.s32.totalorder %s21, 0
      // Predicated region
      $region29: #{depthwise_conv2d.1} parent=27 // pred_check
        %p209 = pneg %p208
      $region30: #{depthwise_conv2d.1} parent=27 // pred_check_branch
        %211 = sbr.rel (%p209) target = $region32
      $region31: #{depthwise_conv2d.1} parent=27 // pred_region
        %s212 = smul.u32 %s19, 432
        %s213 = scalar_lea.vmem %s0, %s212
        %p215 = scmp.lt.u32.totalorder 240, 8
        %p216 = pneg %p215
        // Predicated region
        $region33: #{depthwise_conv2d.1} parent=31 // pred_check
          _
        $region34: #{depthwise_conv2d.1} parent=31 // pred_check_branch
          %218 = sbr.rel (%p215) target = $region36
        $region35: #{depthwise_conv2d.1} parent=31 // pred_region
          %s233 = sand.u32 240, 7
          %p234 = scmp.eq.s32.totalorder %s233, 0
          // Predicated region
          $region48: #{depthwise_conv2d.1} parent=35 // pred_check
            %p235 = pneg %p234
          $region49: #{depthwise_conv2d.1} parent=35 // pred_check_branch
            %237 = sbr.rel (%p235) target = $region51
          $region50: #{depthwise_conv2d.1} parent=35 // pred_region
            loop: start=0, step=1, limit=1
            $region52: #{depthwise_conv2d.1} parent=50 // loop_pre_header
              _
            $region53: #{depthwise_conv2d.1} parent=50 // loop_header
              %s239 = sphi 0, %s243
              %p240 = scmp.ge.s32.totalorder %s239, 1
              %s244 = sphi %s213, %s213
              %s245 = sphi [#allocation2], [#allocation2]
            $region54: #{depthwise_conv2d.1} parent=50 // loop_header_branch
              %242 = sbr.rel (%p240) target = $region58
            $region55: #{depthwise_conv2d.1} parent=50 // loop_body
              %v246 = vld [vmem:[%s244] sm:$0xff]
              %247 = vst [vmem:[%s245] sm:$0xff] %v246
              %v248 = vld [vmem:[%s244 + $0x8] sm:$0xff]
              %249 = vst [vmem:[%s245 + $0x8] sm:$0xff] %v248
              %v250 = vld [vmem:[%s244 + $0x10] sm:$0xff]
              %251 = vst [vmem:[%s245 + $0x10] sm:$0xff] %v250
              %v252 = vld [vmem:[%s244 + $0x18] sm:$0xff]
              %253 = vst [vmem:[%s245 + $0x18] sm:$0xff] %v252
              %v254 = vld [vmem:[%s244 + $0x20] sm:$0xff]
              %255 = vst [vmem:[%s245 + $0x20] sm:$0xff] %v254
              %v256 = vld [vmem:[%s244 + $0x28] sm:$0xff]
              %257 = vst [vmem:[%s245 + $0x28] sm:$0xff] %v256
              %v258 = vld [vmem:[%s244 + $0x30] sm:$0xff]
              %259 = vst [vmem:[%s245 + $0x30] sm:$0xff] %v258
              %v260 = vld [vmem:[%s244 + $0x38] sm:$0xff]
              %261 = vst [vmem:[%s245 + $0x38] sm:$0xff] %v260
              %v262 = vld [vmem:[%s244 + $0x40] sm:$0xff]
              %263 = vst [vmem:[%s245 + $0x40] sm:$0xff] %v262
              %v264 = vld [vmem:[%s244 + $0x48] sm:$0xff]
              %265 = vst [vmem:[%s245 + $0x48] sm:$0xff] %v264
              %v266 = vld [vmem:[%s244 + $0x50] sm:$0xff]
              %267 = vst [vmem:[%s245 + $0x50] sm:$0xff] %v266
              %v268 = vld [vmem:[%s244 + $0x58] sm:$0xff]
              %269 = vst [vmem:[%s245 + $0x58] sm:$0xff] %v268
              %v270 = vld [vmem:[%s244 + $0x60] sm:$0xff]
              %271 = vst [vmem:[%s245 + $0x60] sm:$0xff] %v270
              %v272 = vld [vmem:[%s244 + $0x68] sm:$0xff]
              %273 = vst [vmem:[%s245 + $0x68] sm:$0xff] %v272
              %v274 = vld [vmem:[%s244 + $0x70] sm:$0xff]
              %275 = vst [vmem:[%s245 + $0x70] sm:$0xff] %v274
              %v276 = vld [vmem:[%s244 + $0x78] sm:$0xff]
              %277 = vst [vmem:[%s245 + $0x78] sm:$0xff] %v276
              %v278 = vld [vmem:[%s244 + $0x80] sm:$0xff]
              %279 = vst [vmem:[%s245 + $0x80] sm:$0xff] %v278
              %v280 = vld [vmem:[%s244 + $0x88] sm:$0xff]
              %281 = vst [vmem:[%s245 + $0x88] sm:$0xff] %v280
              %v282 = vld [vmem:[%s244 + $0x90] sm:$0xff]
              %283 = vst [vmem:[%s245 + $0x90] sm:$0xff] %v282
              %v284 = vld [vmem:[%s244 + $0x98] sm:$0xff]
              %285 = vst [vmem:[%s245 + $0x98] sm:$0xff] %v284
              %v286 = vld [vmem:[%s244 + $0xa0] sm:$0xff]
              %287 = vst [vmem:[%s245 + $0xa0] sm:$0xff] %v286
              %v288 = vld [vmem:[%s244 + $0xa8] sm:$0xff]
              %289 = vst [vmem:[%s245 + $0xa8] sm:$0xff] %v288
              %v290 = vld [vmem:[%s244 + $0xb0] sm:$0xff]
              %291 = vst [vmem:[%s245 + $0xb0] sm:$0xff] %v290
              %v292 = vld [vmem:[%s244 + $0xb8] sm:$0xff]
              %293 = vst [vmem:[%s245 + $0xb8] sm:$0xff] %v292
              %v294 = vld [vmem:[%s244 + $0xc0] sm:$0xff]
              %295 = vst [vmem:[%s245 + $0xc0] sm:$0xff] %v294
              %v296 = vld [vmem:[%s244 + $0xc8] sm:$0xff]
              %297 = vst [vmem:[%s245 + $0xc8] sm:$0xff] %v296
              %v298 = vld [vmem:[%s244 + $0xd0] sm:$0xff]
              %299 = vst [vmem:[%s245 + $0xd0] sm:$0xff] %v298
              %v300 = vld [vmem:[%s244 + $0xd8] sm:$0xff]
              %301 = vst [vmem:[%s245 + $0xd8] sm:$0xff] %v300
              %v302 = vld [vmem:[%s244 + $0xe0] sm:$0xff]
              %303 = vst [vmem:[%s245 + $0xe0] sm:$0xff] %v302
              %v304 = vld [vmem:[%s244 + $0xe8] sm:$0xff]
              %305 = vst [vmem:[%s245 + $0xe8] sm:$0xff] %v304
            $region56: #{depthwise_conv2d.1} parent=50 // loop_footer
              %s243 = sadd.s32 1, %s239
            $region57: #{depthwise_conv2d.1} parent=50 // loop_footer_branch
              %238 = sbr.rel target = $region53
            $region58: #{depthwise_conv2d.1} parent=50 // loop_exit
              _
          $region51: #{depthwise_conv2d.1} parent=35 // pred_fallthru
            _
          %p306 = pneg %p234
          // Predicated region
          $region59: #{depthwise_conv2d.1} parent=35 // pred_check
            _
          $region60: #{depthwise_conv2d.1} parent=35 // pred_check_branch
            %308 = sbr.rel (%p234) target = $region62
          $region61: #{depthwise_conv2d.1} parent=35 // pred_region
            %s309 = sand.u32 240, 7
          $region62: #{depthwise_conv2d.1} parent=35 // pred_fallthru
            _
        $region36: #{depthwise_conv2d.1} parent=31 // pred_fallthru
          _
        // Predicated region
        $region37: #{depthwise_conv2d.1} parent=31 // pred_check
          %p219 = pneg %p215
        $region38: #{depthwise_conv2d.1} parent=31 // pred_check_branch
          %221 = sbr.rel (%p219) target = $region40
        $region39: #{depthwise_conv2d.1} parent=31 // pred_region
          %s222 = sshllo.u32 0, 240
          loop: start=0, step=1, limit=1
          $region41: #{depthwise_conv2d.1} parent=39 // loop_pre_header
            _
          $region42: #{depthwise_conv2d.1} parent=39 // loop_header
            %s224 = sphi 0, %s228
            %p225 = scmp.ge.s32.totalorder %s224, 1
            %s229 = sphi %s213, %s213
            %s230 = sphi [#allocation2], [#allocation2]
          $region43: #{depthwise_conv2d.1} parent=39 // loop_header_branch
            %227 = sbr.rel (%p225) target = $region47
          $region44: #{depthwise_conv2d.1} parent=39 // loop_body
            %v231 = vld [vmem:[%s229] sm:%s222]
            %232 = vst [vmem:[%s230] sm:%s222] %v231
          $region45: #{depthwise_conv2d.1} parent=39 // loop_footer
            %s228 = sadd.s32 1, %s224
          $region46: #{depthwise_conv2d.1} parent=39 // loop_footer_branch
            %223 = sbr.rel target = $region42
          $region47: #{depthwise_conv2d.1} parent=39 // loop_exit
            _
        $region40: #{depthwise_conv2d.1} parent=31 // pred_fallthru
          _
        // Predicated region
        $region63: #{depthwise_conv2d.1} parent=31 // pred_check
          _
        $region64: #{depthwise_conv2d.1} parent=31 // pred_check_branch
          %312 = sbr.rel (0) target = $region66
        $region65: #{depthwise_conv2d.1} parent=31 // pred_region
          %313 = vsyncadd [#allocation3], 3840
        $region66: #{depthwise_conv2d.1} parent=31 // pred_fallthru
          _
      $region32: #{depthwise_conv2d.1} parent=27 // pred_fallthru
        _
      %s314 = sadd.s32 %s21, 1
      %p315 = scmp.lt.s32.totalorder %s314, 2
      // Predicated region
      $region67: #{depthwise_conv2d.1} parent=27 // pred_check
        %p316 = pneg %p315
      $region68: #{depthwise_conv2d.1} parent=27 // pred_check_branch
        %318 = sbr.rel (%p316) target = $region70
      $region69: #{depthwise_conv2d.1} parent=27 // pred_region
        %s319 = ssub.s32 1, %s207
        %s320 = smul.u32 %s314, 8
        %s321 = smul.u32 %s320, 24
        %s322 = smul.u32 %s19, 432
        %s323 = sadd.s32 %s321, %s322
        %s324 = scalar_lea.vmem %s0, %s323
        %s325 = smul.u32 %s319, 240
        %s326 = scalar_lea.vmem [#allocation2], %s325
        %s327 = scalar_lea.sflag [#allocation3], %s319
        %p329 = scmp.lt.u32.totalorder 240, 8
        %p330 = pneg %p329
        // Predicated region
        $region71: #{depthwise_conv2d.1} parent=69 // pred_check
          _
        $region72: #{depthwise_conv2d.1} parent=69 // pred_check_branch
          %332 = sbr.rel (%p329) target = $region74
        $region73: #{depthwise_conv2d.1} parent=69 // pred_region
          %s347 = sand.u32 240, 7
          %p348 = scmp.eq.s32.totalorder %s347, 0
          // Predicated region
          $region86: #{depthwise_conv2d.1} parent=73 // pred_check
            %p349 = pneg %p348
          $region87: #{depthwise_conv2d.1} parent=73 // pred_check_branch
            %351 = sbr.rel (%p349) target = $region89
          $region88: #{depthwise_conv2d.1} parent=73 // pred_region
            loop: start=0, step=1, limit=1
            $region90: #{depthwise_conv2d.1} parent=88 // loop_pre_header
              _
            $region91: #{depthwise_conv2d.1} parent=88 // loop_header
              %s353 = sphi 0, %s357
              %p354 = scmp.ge.s32.totalorder %s353, 1
              %s358 = sphi %s324, %s324
              %s359 = sphi %s326, %s326
            $region92: #{depthwise_conv2d.1} parent=88 // loop_header_branch
              %356 = sbr.rel (%p354) target = $region96
            $region93: #{depthwise_conv2d.1} parent=88 // loop_body
              %v360 = vld [vmem:[%s358] sm:$0xff]
              %361 = vst [vmem:[%s359] sm:$0xff] %v360
              %v362 = vld [vmem:[%s358 + $0x8] sm:$0xff]
              %363 = vst [vmem:[%s359 + $0x8] sm:$0xff] %v362
              %v364 = vld [vmem:[%s358 + $0x10] sm:$0xff]
              %365 = vst [vmem:[%s359 + $0x10] sm:$0xff] %v364
              %v366 = vld [vmem:[%s358 + $0x18] sm:$0xff]
              %367 = vst [vmem:[%s359 + $0x18] sm:$0xff] %v366
              %v368 = vld [vmem:[%s358 + $0x20] sm:$0xff]
              %369 = vst [vmem:[%s359 + $0x20] sm:$0xff] %v368
              %v370 = vld [vmem:[%s358 + $0x28] sm:$0xff]
              %371 = vst [vmem:[%s359 + $0x28] sm:$0xff] %v370
              %v372 = vld [vmem:[%s358 + $0x30] sm:$0xff]
              %373 = vst [vmem:[%s359 + $0x30] sm:$0xff] %v372
              %v374 = vld [vmem:[%s358 + $0x38] sm:$0xff]
              %375 = vst [vmem:[%s359 + $0x38] sm:$0xff] %v374
              %v376 = vld [vmem:[%s358 + $0x40] sm:$0xff]
              %377 = vst [vmem:[%s359 + $0x40] sm:$0xff] %v376
              %v378 = vld [vmem:[%s358 + $0x48] sm:$0xff]
              %379 = vst [vmem:[%s359 + $0x48] sm:$0xff] %v378
              %v380 = vld [vmem:[%s358 + $0x50] sm:$0xff]
              %381 = vst [vmem:[%s359 + $0x50] sm:$0xff] %v380
              %v382 = vld [vmem:[%s358 + $0x58] sm:$0xff]
              %383 = vst [vmem:[%s359 + $0x58] sm:$0xff] %v382
              %v384 = vld [vmem:[%s358 + $0x60] sm:$0xff]
              %385 = vst [vmem:[%s359 + $0x60] sm:$0xff] %v384
              %v386 = vld [vmem:[%s358 + $0x68] sm:$0xff]
              %387 = vst [vmem:[%s359 + $0x68] sm:$0xff] %v386
              %v388 = vld [vmem:[%s358 + $0x70] sm:$0xff]
              %389 = vst [vmem:[%s359 + $0x70] sm:$0xff] %v388
              %v390 = vld [vmem:[%s358 + $0x78] sm:$0xff]
              %391 = vst [vmem:[%s359 + $0x78] sm:$0xff] %v390
              %v392 = vld [vmem:[%s358 + $0x80] sm:$0xff]
              %393 = vst [vmem:[%s359 + $0x80] sm:$0xff] %v392
              %v394 = vld [vmem:[%s358 + $0x88] sm:$0xff]
              %395 = vst [vmem:[%s359 + $0x88] sm:$0xff] %v394
              %v396 = vld [vmem:[%s358 + $0x90] sm:$0xff]
              %397 = vst [vmem:[%s359 + $0x90] sm:$0xff] %v396
              %v398 = vld [vmem:[%s358 + $0x98] sm:$0xff]
              %399 = vst [vmem:[%s359 + $0x98] sm:$0xff] %v398
              %v400 = vld [vmem:[%s358 + $0xa0] sm:$0xff]
              %401 = vst [vmem:[%s359 + $0xa0] sm:$0xff] %v400
              %v402 = vld [vmem:[%s358 + $0xa8] sm:$0xff]
              %403 = vst [vmem:[%s359 + $0xa8] sm:$0xff] %v402
              %v404 = vld [vmem:[%s358 + $0xb0] sm:$0xff]
              %405 = vst [vmem:[%s359 + $0xb0] sm:$0xff] %v404
              %v406 = vld [vmem:[%s358 + $0xb8] sm:$0xff]
              %407 = vst [vmem:[%s359 + $0xb8] sm:$0xff] %v406
              %v408 = vld [vmem:[%s358 + $0xc0] sm:$0xff]
              %409 = vst [vmem:[%s359 + $0xc0] sm:$0xff] %v408
              %v410 = vld [vmem:[%s358 + $0xc8] sm:$0xff]
              %411 = vst [vmem:[%s359 + $0xc8] sm:$0xff] %v410
              %v412 = vld [vmem:[%s358 + $0xd0] sm:$0xff]
              %413 = vst [vmem:[%s359 + $0xd0] sm:$0xff] %v412
              %v414 = vld [vmem:[%s358 + $0xd8] sm:$0xff]
              %415 = vst [vmem:[%s359 + $0xd8] sm:$0xff] %v414
              %v416 = vld [vmem:[%s358 + $0xe0] sm:$0xff]
              %417 = vst [vmem:[%s359 + $0xe0] sm:$0xff] %v416
              %v418 = vld [vmem:[%s358 + $0xe8] sm:$0xff]
              %419 = vst [vmem:[%s359 + $0xe8] sm:$0xff] %v418
            $region94: #{depthwise_conv2d.1} parent=88 // loop_footer
              %s357 = sadd.s32 1, %s353
            $region95: #{depthwise_conv2d.1} parent=88 // loop_footer_branch
              %352 = sbr.rel target = $region91
            $region96: #{depthwise_conv2d.1} parent=88 // loop_exit
              _
          $region89: #{depthwise_conv2d.1} parent=73 // pred_fallthru
            _
          %p420 = pneg %p348
          // Predicated region
          $region97: #{depthwise_conv2d.1} parent=73 // pred_check
            _
          $region98: #{depthwise_conv2d.1} parent=73 // pred_check_branch
            %422 = sbr.rel (%p348) target = $region100
          $region99: #{depthwise_conv2d.1} parent=73 // pred_region
            %s423 = sand.u32 240, 7
          $region100: #{depthwise_conv2d.1} parent=73 // pred_fallthru
            _
        $region74: #{depthwise_conv2d.1} parent=69 // pred_fallthru
          _
        // Predicated region
        $region75: #{depthwise_conv2d.1} parent=69 // pred_check
          %p333 = pneg %p329
        $region76: #{depthwise_conv2d.1} parent=69 // pred_check_branch
          %335 = sbr.rel (%p333) target = $region78
        $region77: #{depthwise_conv2d.1} parent=69 // pred_region
          %s336 = sshllo.u32 0, 240
          loop: start=0, step=1, limit=1
          $region79: #{depthwise_conv2d.1} parent=77 // loop_pre_header
            _
          $region80: #{depthwise_conv2d.1} parent=77 // loop_header
            %s338 = sphi 0, %s342
            %p339 = scmp.ge.s32.totalorder %s338, 1
            %s343 = sphi %s324, %s324
            %s344 = sphi %s326, %s326
          $region81: #{depthwise_conv2d.1} parent=77 // loop_header_branch
            %341 = sbr.rel (%p339) target = $region85
          $region82: #{depthwise_conv2d.1} parent=77 // loop_body
            %v345 = vld [vmem:[%s343] sm:%s336]
            %346 = vst [vmem:[%s344] sm:%s336] %v345
          $region83: #{depthwise_conv2d.1} parent=77 // loop_footer
            %s342 = sadd.s32 1, %s338
          $region84: #{depthwise_conv2d.1} parent=77 // loop_footer_branch
            %337 = sbr.rel target = $region80
          $region85: #{depthwise_conv2d.1} parent=77 // loop_exit
            _
        $region78: #{depthwise_conv2d.1} parent=69 // pred_fallthru
          _
        // Predicated region
        $region101: #{depthwise_conv2d.1} parent=69 // pred_check
          _
        $region102: #{depthwise_conv2d.1} parent=69 // pred_check_branch
          %426 = sbr.rel (0) target = $region104
        $region103: #{depthwise_conv2d.1} parent=69 // pred_region
          %427 = vsyncadd %s327, 3840
        $region104: #{depthwise_conv2d.1} parent=69 // pred_fallthru
          _
      $region70: #{depthwise_conv2d.1} parent=27 // pred_fallthru
        _
      %s428 = scalar_lea.sflag [#allocation3], %s207
      %s429 = smul.u32 10, 24
      %s430 = smul.u32 %s429, 1
      %s431 = sshll.u32 %s430, 4
      %432 = dma.done %s428, %s431
      %v433 = vld [vmem:[%s178] sm:$0x1]
      %v434 = vld [vmem:[%s178 + $0x1] sm:$0x1]
      %v435 = vld [vmem:[%s178 + $0x2] sm:$0x1]
      %v436 = vld [vmem:[%s178 + $0x3] sm:$0x1]
      %v437 = vld [vmem:[%s178 + $0x4] sm:$0x1]
      %v438 = vld [vmem:[%s178 + $0x5] sm:$0x1]
      %v439 = vld [vmem:[%s178 + $0x6] sm:$0x1]
      %v440 = vld [vmem:[%s178 + $0x7] sm:$0x1]
      %v441 = vld [vmem:[%s178 + $0x8] sm:$0x1]
      %v442 = vld [vmem:[%s181] sm:$0x1]
      %s443 = smul.u32 %s207, 240
      %s444 = scalar_lea.vmem [#allocation2], %s443
      %v445 = vld [vmem:[%s444] sm:$0xff]
      %v446 = vld [vmem:[%s444 + $0x8] sm:$0xff]
      %v447 = vld [vmem:[%s444 + $0x10] sm:$0xff]
      %v448 = vlaneseq
      %v449 = vshrl.u32 %v448, 7
      %v450 = vsub.s32 0, %v449
      %v451 = vrot.slane %v433, %v450
      %v452 = vmul.f32 %v445, %v451
      %v453 = vmul.f32 %v446, %v451
      %v454 = vlaneseq
      %v455 = vshrl.u32 %v454, 7
      %v456 = vsub.s32 0, %v455
      %v457 = vrot.slane %v434, %v456
      %v458 = vmul.f32 %v445, %v457
      %v459 = vmul.f32 %v446, %v457
      %v460 = vmul.f32 %v447, %v457
      %vm464 = vcmask 1046528
      %v465 = vrot.slane %v458, 1
      %v466 = vrot.slane %v459, 1
      %v467 = vsel %vm464, %v465, %v466
      %v468 = vrot.slane %v460, 1
      %v469 = vsel %vm464, %v466, %v468
      %v472 = vadd.f32 %v452, %v467
      %v473 = vadd.f32 %v453, %v469
      %v474 = vlaneseq
      %v475 = vshrl.u32 %v474, 7
      %v476 = vsub.s32 0, %v475
      %v477 = vrot.slane %v435, %v476
      %v478 = vmul.f32 %v445, %v477
      %v479 = vmul.f32 %v446, %v477
      %v480 = vmul.f32 %v447, %v477
      %vm484 = vcmask 1045504
      %v485 = vrot.slane %v478, 2
      %v486 = vrot.slane %v479, 2
      %v487 = vsel %vm484, %v485, %v486
      %v488 = vrot.slane %v480, 2
      %v489 = vsel %vm484, %v486, %v488
      %v492 = vadd.f32 %v472, %v487
      %v493 = vadd.f32 %v473, %v489
      %s494 = sadd.s32 24, %s443
      %s495 = scalar_lea.vmem [#allocation2], %s494
      %v496 = vld [vmem:[%s495] sm:$0xff]
      %v497 = vld [vmem:[%s495 + $0x8] sm:$0xff]
      %v498 = vld [vmem:[%s495 + $0x10] sm:$0xff]
      %v499 = vlaneseq
      %v500 = vshrl.u32 %v499, 7
      %v501 = vsub.s32 0, %v500
      %v502 = vrot.slane %v436, %v501
      %v503 = vmul.f32 %v496, %v502
      %v504 = vmul.f32 %v497, %v502
      %v505 = vadd.f32 %v492, %v503
      %v506 = vadd.f32 %v493, %v504
      %v507 = vlaneseq
      %v508 = vshrl.u32 %v507, 7
      %v509 = vsub.s32 0, %v508
      %v510 = vrot.slane %v437, %v509
      %v511 = vmul.f32 %v496, %v510
      %v512 = vmul.f32 %v497, %v510
      %v513 = vmul.f32 %v498, %v510
      %v517 = vrot.slane %v511, 1
      %v518 = vrot.slane %v512, 1
      %v519 = vsel %vm464, %v517, %v518
      %v520 = vrot.slane %v513, 1
      %v521 = vsel %vm464, %v518, %v520
      %v524 = vadd.f32 %v505, %v519
      %v525 = vadd.f32 %v506, %v521
      %v526 = vlaneseq
      %v527 = vshrl.u32 %v526, 7
      %v528 = vsub.s32 0, %v527
      %v529 = vrot.slane %v438, %v528
      %v530 = vmul.f32 %v496, %v529
      %v531 = vmul.f32 %v497, %v529
      %v532 = vmul.f32 %v498, %v529
      %v536 = vrot.slane %v530, 2
      %v537 = vrot.slane %v531, 2
      %v538 = vsel %vm484, %v536, %v537
      %v539 = vrot.slane %v532, 2
      %v540 = vsel %vm484, %v537, %v539
      %v543 = vadd.f32 %v524, %v538
      %v544 = vadd.f32 %v525, %v540
      %s545 = sadd.s32 48, %s443
      %s546 = scalar_lea.vmem [#allocation2], %s545
      %v547 = vld [vmem:[%s546] sm:$0xff]
      %v548 = vld [vmem:[%s546 + $0x8] sm:$0xff]
      %v549 = vld [vmem:[%s546 + $0x10] sm:$0xff]
      %v550 = vlaneseq
      %v551 = vshrl.u32 %v550, 7
      %v552 = vsub.s32 0, %v551
      %v553 = vrot.slane %v439, %v552
      %v554 = vmul.f32 %v547, %v553
      %v555 = vmul.f32 %v548, %v553
      %v556 = vadd.f32 %v543, %v554
      %v557 = vadd.f32 %v544, %v555
      %v558 = vlaneseq
      %v559 = vshrl.u32 %v558, 7
      %v560 = vsub.s32 0, %v559
      %v561 = vrot.slane %v440, %v560
      %v562 = vmul.f32 %v547, %v561
      %v563 = vmul.f32 %v548, %v561
      %v564 = vmul.f32 %v549, %v561
      %v568 = vrot.slane %v562, 1
      %v569 = vrot.slane %v563, 1
      %v570 = vsel %vm464, %v568, %v569
      %v571 = vrot.slane %v564, 1
      %v572 = vsel %vm464, %v569, %v571
      %v575 = vadd.f32 %v556, %v570
      %v576 = vadd.f32 %v557, %v572
      %v577 = vlaneseq
      %v578 = vshrl.u32 %v577, 7
      %v579 = vsub.s32 0, %v578
      %v580 = vrot.slane %v441, %v579
      %v581 = vmul.f32 %v547, %v580
      %v582 = vmul.f32 %v548, %v580
      %v583 = vmul.f32 %v549, %v580
      %v587 = vrot.slane %v581, 2
      %v588 = vrot.slane %v582, 2
      %v589 = vsel %vm484, %v587, %v588
      %v590 = vrot.slane %v583, 2
      %v591 = vsel %vm484, %v588, %v590
      %v594 = vadd.f32 %v575, %v589
      %v595 = vadd.f32 %v576, %v591
      %v597 = vlaneseq
      %v598 = vshrl.u32 %v597, 7
      %v599 = vsub.s32 0, %v598
      %v600 = vrot.slane %v442, %v599
      %v602 = vadd.f32 %v594, %v600
      %v603 = vadd.f32 %v595, %v600
      %604 = vst [vmem:[%s194] sm:$0xff] %v602
      %605 = vst [vmem:[%s194 + $0x8] sm:$0xff] %v603
      %v606 = vld [vmem:[%s495] sm:$0xff]
      %v607 = vld [vmem:[%s495 + $0x8] sm:$0xff]
      %v608 = vld [vmem:[%s495 + $0x10] sm:$0xff]
      %v609 = vmul.f32 %v606, %v451
      %v610 = vmul.f32 %v607, %v451
      %v611 = vmul.f32 %v606, %v457
      %v612 = vmul.f32 %v607, %v457
      %v613 = vmul.f32 %v608, %v457
      %v617 = vrot.slane %v611, 1
      %v618 = vrot.slane %v612, 1
      %v619 = vsel %vm464, %v617, %v618
      %v620 = vrot.slane %v613, 1
      %v621 = vsel %vm464, %v618, %v620
      %v624 = vadd.f32 %v609, %v619
      %v625 = vadd.f32 %v610, %v621
      %v626 = vmul.f32 %v606, %v477
      %v627 = vmul.f32 %v607, %v477
      %v628 = vmul.f32 %v608, %v477
      %v632 = vrot.slane %v626, 2
      %v633 = vrot.slane %v627, 2
      %v634 = vsel %vm484, %v632, %v633
      %v635 = vrot.slane %v628, 2
      %v636 = vsel %vm484, %v633, %v635
      %v639 = vadd.f32 %v624, %v634
      %v640 = vadd.f32 %v625, %v636
      %v641 = vld [vmem:[%s546] sm:$0xff]
      %v642 = vld [vmem:[%s546 + $0x8] sm:$0xff]
      %v643 = vld [vmem:[%s546 + $0x10] sm:$0xff]
      %v644 = vmul.f32 %v641, %v502
      %v645 = vmul.f32 %v642, %v502
      %v646 = vadd.f32 %v639, %v644
      %v647 = vadd.f32 %v640, %v645
      %v648 = vmul.f32 %v641, %v510
      %v649 = vmul.f32 %v642, %v510
      %v650 = vmul.f32 %v643, %v510
      %v654 = vrot.slane %v648, 1
      %v655 = vrot.slane %v649, 1
      %v656 = vsel %vm464, %v654, %v655
      %v657 = vrot.slane %v650, 1
      %v658 = vsel %vm464, %v655, %v657
      %v661 = vadd.f32 %v646, %v656
      %v662 = vadd.f32 %v647, %v658
      %v663 = vmul.f32 %v641, %v529
      %v664 = vmul.f32 %v642, %v529
      %v665 = vmul.f32 %v643, %v529
      %v669 = vrot.slane %v663, 2
      %v670 = vrot.slane %v664, 2
      %v671 = vsel %vm484, %v669, %v670
      %v672 = vrot.slane %v665, 2
      %v673 = vsel %vm484, %v670, %v672
      %v676 = vadd.f32 %v661, %v671
      %v677 = vadd.f32 %v662, %v673
      %s678 = sadd.s32 72, %s443
      %s679 = scalar_lea.vmem [#allocation2], %s678
      %v680 = vld [vmem:[%s679] sm:$0xff]
      %v681 = vld [vmem:[%s679 + $0x8] sm:$0xff]
      %v682 = vld [vmem:[%s679 + $0x10] sm:$0xff]
      %v683 = vmul.f32 %v680, %v553
      %v684 = vmul.f32 %v681, %v553
      %v685 = vadd.f32 %v676, %v683
      %v686 = vadd.f32 %v677, %v684
      %v687 = vmul.f32 %v680, %v561
      %v688 = vmul.f32 %v681, %v561
      %v689 = vmul.f32 %v682, %v561
      %v693 = vrot.slane %v687, 1
      %v694 = vrot.slane %v688, 1
      %v695 = vsel %vm464, %v693, %v694
      %v696 = vrot.slane %v689, 1
      %v697 = vsel %vm464, %v694, %v696
      %v700 = vadd.f32 %v685, %v695
      %v701 = vadd.f32 %v686, %v697
      %v702 = vmul.f32 %v680, %v580
      %v703 = vmul.f32 %v681, %v580
      %v704 = vmul.f32 %v682, %v580
      %v708 = vrot.slane %v702, 2
      %v709 = vrot.slane %v703, 2
      %v710 = vsel %vm484, %v708, %v709
      %v711 = vrot.slane %v704, 2
      %v712 = vsel %vm484, %v709, %v711
      %v715 = vadd.f32 %v700, %v710
      %v716 = vadd.f32 %v701, %v712
      %v717 = vadd.f32 %v715, %v600
      %v718 = vadd.f32 %v716, %v600
      %s719 = scalar_lea.vmem %s194, 16
      %720 = vst [vmem:[%s719] sm:$0xff] %v717
      %721 = vst [vmem:[%s719 + $0x8] sm:$0xff] %v718
      %v722 = vld [vmem:[%s546] sm:$0xff]
      %v723 = vld [vmem:[%s546 + $0x8] sm:$0xff]
      %v724 = vld [vmem:[%s546 + $0x10] sm:$0xff]
      %v725 = vmul.f32 %v722, %v451
      %v726 = vmul.f32 %v723, %v451
      %v727 = vmul.f32 %v722, %v457
      %v728 = vmul.f32 %v723, %v457
      %v729 = vmul.f32 %v724, %v457
      %v733 = vrot.slane %v727, 1
      %v734 = vrot.slane %v728, 1
      %v735 = vsel %vm464, %v733, %v734
      %v736 = vrot.slane %v729, 1
      %v737 = vsel %vm464, %v734, %v736
      %v740 = vadd.f32 %v725, %v735
      %v741 = vadd.f32 %v726, %v737
      %v742 = vmul.f32 %v722, %v477
      %v743 = vmul.f32 %v723, %v477
      %v744 = vmul.f32 %v724, %v477
      %v748 = vrot.slane %v742, 2
      %v749 = vrot.slane %v743, 2
      %v750 = vsel %vm484, %v748, %v749
      %v751 = vrot.slane %v744, 2
      %v752 = vsel %vm484, %v749, %v751
      %v755 = vadd.f32 %v740, %v750
      %v756 = vadd.f32 %v741, %v752
      %v757 = vld [vmem:[%s679] sm:$0xff]
      %v758 = vld [vmem:[%s679 + $0x8] sm:$0xff]
      %v759 = vld [vmem:[%s679 + $0x10] sm:$0xff]
      %v760 = vmul.f32 %v757, %v502
      %v761 = vmul.f32 %v758, %v502
      %v762 = vadd.f32 %v755, %v760
      %v763 = vadd.f32 %v756, %v761
      %v764 = vmul.f32 %v757, %v510
      %v765 = vmul.f32 %v758, %v510
      %v766 = vmul.f32 %v759, %v510
      %v770 = vrot.slane %v764, 1
      %v771 = vrot.slane %v765, 1
      %v772 = vsel %vm464, %v770, %v771
      %v773 = vrot.slane %v766, 1
      %v774 = vsel %vm464, %v771, %v773
      %v777 = vadd.f32 %v762, %v772
      %v778 = vadd.f32 %v763, %v774
      %v779 = vmul.f32 %v757, %v529
      %v780 = vmul.f32 %v758, %v529
      %v781 = vmul.f32 %v759, %v529
      %v785 = vrot.slane %v779, 2
      %v786 = vrot.slane %v780, 2
      %v787 = vsel %vm484, %v785, %v786
      %v788 = vrot.slane %v781, 2
      %v789 = vsel %vm484, %v786, %v788
      %v792 = vadd.f32 %v777, %v787
      %v793 = vadd.f32 %v778, %v789
      %s794 = sadd.s32 96, %s443
      %s795 = scalar_lea.vmem [#allocation2], %s794
      %v796 = vld [vmem:[%s795] sm:$0xff]
      %v797 = vld [vmem:[%s795 + $0x8] sm:$0xff]
      %v798 = vld [vmem:[%s795 + $0x10] sm:$0xff]
      %v799 = vmul.f32 %v796, %v553
      %v800 = vmul.f32 %v797, %v553
      %v801 = vadd.f32 %v792, %v799
      %v802 = vadd.f32 %v793, %v800
      %v803 = vmul.f32 %v796, %v561
      %v804 = vmul.f32 %v797, %v561
      %v805 = vmul.f32 %v798, %v561
      %v809 = vrot.slane %v803, 1
      %v810 = vrot.slane %v804, 1
      %v811 = vsel %vm464, %v809, %v810
      %v812 = vrot.slane %v805, 1
      %v813 = vsel %vm464, %v810, %v812
      %v816 = vadd.f32 %v801, %v811
      %v817 = vadd.f32 %v802, %v813
      %v818 = vmul.f32 %v796, %v580
      %v819 = vmul.f32 %v797, %v580
      %v820 = vmul.f32 %v798, %v580
      %v824 = vrot.slane %v818, 2
      %v825 = vrot.slane %v819, 2
      %v826 = vsel %vm484, %v824, %v825
      %v827 = vrot.slane %v820, 2
      %v828 = vsel %vm484, %v825, %v827
      %v831 = vadd.f32 %v816, %v826
      %v832 = vadd.f32 %v817, %v828
      %v833 = vadd.f32 %v831, %v600
      %v834 = vadd.f32 %v832, %v600
      %s835 = scalar_lea.vmem %s194, 32
      %836 = vst [vmem:[%s835] sm:$0xff] %v833
      %837 = vst [vmem:[%s835 + $0x8] sm:$0xff] %v834
      %v838 = vld [vmem:[%s679] sm:$0xff]
      %v839 = vld [vmem:[%s679 + $0x8] sm:$0xff]
      %v840 = vld [vmem:[%s679 + $0x10] sm:$0xff]
      %v841 = vmul.f32 %v838, %v451
      %v842 = vmul.f32 %v839, %v451
      %v843 = vmul.f32 %v838, %v457
      %v844 = vmul.f32 %v839, %v457
      %v845 = vmul.f32 %v840, %v457
      %v849 = vrot.slane %v843, 1
      %v850 = vrot.slane %v844, 1
      %v851 = vsel %vm464, %v849, %v850
      %v852 = vrot.slane %v845, 1
      %v853 = vsel %vm464, %v850, %v852
      %v856 = vadd.f32 %v841, %v851
      %v857 = vadd.f32 %v842, %v853
      %v858 = vmul.f32 %v838, %v477
      %v859 = vmul.f32 %v839, %v477
      %v860 = vmul.f32 %v840, %v477
      %v864 = vrot.slane %v858, 2
      %v865 = vrot.slane %v859, 2
      %v866 = vsel %vm484, %v864, %v865
      %v867 = vrot.slane %v860, 2
      %v868 = vsel %vm484, %v865, %v867
      %v871 = vadd.f32 %v856, %v866
      %v872 = vadd.f32 %v857, %v868
      %v873 = vld [vmem:[%s795] sm:$0xff]
      %v874 = vld [vmem:[%s795 + $0x8] sm:$0xff]
      %v875 = vld [vmem:[%s795 + $0x10] sm:$0xff]
      %v876 = vmul.f32 %v873, %v502
      %v877 = vmul.f32 %v874, %v502
      %v878 = vadd.f32 %v871, %v876
      %v879 = vadd.f32 %v872, %v877
      %v880 = vmul.f32 %v873, %v510
      %v881 = vmul.f32 %v874, %v510
      %v882 = vmul.f32 %v875, %v510
      %v886 = vrot.slane %v880, 1
      %v887 = vrot.slane %v881, 1
      %v888 = vsel %vm464, %v886, %v887
      %v889 = vrot.slane %v882, 1
      %v890 = vsel %vm464, %v887, %v889
      %v893 = vadd.f32 %v878, %v888
      %v894 = vadd.f32 %v879, %v890
      %v895 = vmul.f32 %v873, %v529
      %v896 = vmul.f32 %v874, %v529
      %v897 = vmul.f32 %v875, %v529
      %v901 = vrot.slane %v895, 2
      %v902 = vrot.slane %v896, 2
      %v903 = vsel %vm484, %v901, %v902
      %v904 = vrot.slane %v897, 2
      %v905 = vsel %vm484, %v902, %v904
      %v908 = vadd.f32 %v893, %v903
      %v909 = vadd.f32 %v894, %v905
      %s910 = sadd.s32 120, %s443
      %s911 = scalar_lea.vmem [#allocation2], %s910
      %v912 = vld [vmem:[%s911] sm:$0xff]
      %v913 = vld [vmem:[%s911 + $0x8] sm:$0xff]
      %v914 = vld [vmem:[%s911 + $0x10] sm:$0xff]
      %v915 = vmul.f32 %v912, %v553
      %v916 = vmul.f32 %v913, %v553
      %v917 = vadd.f32 %v908, %v915
      %v918 = vadd.f32 %v909, %v916
      %v919 = vmul.f32 %v912, %v561
      %v920 = vmul.f32 %v913, %v561
      %v921 = vmul.f32 %v914, %v561
      %v925 = vrot.slane %v919, 1
      %v926 = vrot.slane %v920, 1
      %v927 = vsel %vm464, %v925, %v926
      %v928 = vrot.slane %v921, 1
      %v929 = vsel %vm464, %v926, %v928
      %v932 = vadd.f32 %v917, %v927
      %v933 = vadd.f32 %v918, %v929
      %v934 = vmul.f32 %v912, %v580
      %v935 = vmul.f32 %v913, %v580
      %v936 = vmul.f32 %v914, %v580
      %v940 = vrot.slane %v934, 2
      %v941 = vrot.slane %v935, 2
      %v942 = vsel %vm484, %v940, %v941
      %v943 = vrot.slane %v936, 2
      %v944 = vsel %vm484, %v941, %v943
      %v947 = vadd.f32 %v932, %v942
      %v948 = vadd.f32 %v933, %v944
      %v949 = vadd.f32 %v947, %v600
      %v950 = vadd.f32 %v948, %v600
      %s951 = scalar_lea.vmem %s194, 48
      %952 = vst [vmem:[%s951] sm:$0xff] %v949
      %953 = vst [vmem:[%s951 + $0x8] sm:$0xff] %v950
      %v954 = vld [vmem:[%s795] sm:$0xff]
      %v955 = vld [vmem:[%s795 + $0x8] sm:$0xff]
      %v956 = vld [vmem:[%s795 + $0x10] sm:$0xff]
      %v957 = vmul.f32 %v954, %v451
      %v958 = vmul.f32 %v955, %v451
      %v959 = vmul.f32 %v954, %v457
      %v960 = vmul.f32 %v955, %v457
      %v961 = vmul.f32 %v956, %v457
      %v965 = vrot.slane %v959, 1
      %v966 = vrot.slane %v960, 1
      %v967 = vsel %vm464, %v965, %v966
      %v968 = vrot.slane %v961, 1
      %v969 = vsel %vm464, %v966, %v968
      %v972 = vadd.f32 %v957, %v967
      %v973 = vadd.f32 %v958, %v969
      %v974 = vmul.f32 %v954, %v477
      %v975 = vmul.f32 %v955, %v477
      %v976 = vmul.f32 %v956, %v477
      %v980 = vrot.slane %v974, 2
      %v981 = vrot.slane %v975, 2
      %v982 = vsel %vm484, %v980, %v981
      %v983 = vrot.slane %v976, 2
      %v984 = vsel %vm484, %v981, %v983
      %v987 = vadd.f32 %v972, %v982
      %v988 = vadd.f32 %v973, %v984
      %v989 = vld [vmem:[%s911] sm:$0xff]
      %v990 = vld [vmem:[%s911 + $0x8] sm:$0xff]
      %v991 = vld [vmem:[%s911 + $0x10] sm:$0xff]
      %v992 = vmul.f32 %v989, %v502
      %v993 = vmul.f32 %v990, %v502
      %v994 = vadd.f32 %v987, %v992
      %v995 = vadd.f32 %v988, %v993
      %v996 = vmul.f32 %v989, %v510
      %v997 = vmul.f32 %v990, %v510
      %v998 = vmul.f32 %v991, %v510
      %v1002 = vrot.slane %v996, 1
      %v1003 = vrot.slane %v997, 1
      %v1004 = vsel %vm464, %v1002, %v1003
      %v1005 = vrot.slane %v998, 1
      %v1006 = vsel %vm464, %v1003, %v1005
      %v1009 = vadd.f32 %v994, %v1004
      %v1010 = vadd.f32 %v995, %v1006
      %v1011 = vmul.f32 %v989, %v529
      %v1012 = vmul.f32 %v990, %v529
      %v1013 = vmul.f32 %v991, %v529
      %v1017 = vrot.slane %v1011, 2
      %v1018 = vrot.slane %v1012, 2
      %v1019 = vsel %vm484, %v1017, %v1018
      %v1020 = vrot.slane %v1013, 2
      %v1021 = vsel %vm484, %v1018, %v1020
      %v1024 = vadd.f32 %v1009, %v1019
      %v1025 = vadd.f32 %v1010, %v1021
      %s1026 = sadd.s32 144, %s443
      %s1027 = scalar_lea.vmem [#allocation2], %s1026
      %v1028 = vld [vmem:[%s1027] sm:$0xff]
      %v1029 = vld [vmem:[%s1027 + $0x8] sm:$0xff]
      %v1030 = vld [vmem:[%s1027 + $0x10] sm:$0xff]
      %v1031 = vmul.f32 %v1028, %v553
      %v1032 = vmul.f32 %v1029, %v553
      %v1033 = vadd.f32 %v1024, %v1031
      %v1034 = vadd.f32 %v1025, %v1032
      %v1035 = vmul.f32 %v1028, %v561
      %v1036 = vmul.f32 %v1029, %v561
      %v1037 = vmul.f32 %v1030, %v561
      %v1041 = vrot.slane %v1035, 1
      %v1042 = vrot.slane %v1036, 1
      %v1043 = vsel %vm464, %v1041, %v1042
      %v1044 = vrot.slane %v1037, 1
      %v1045 = vsel %vm464, %v1042, %v1044
      %v1048 = vadd.f32 %v1033, %v1043
      %v1049 = vadd.f32 %v1034, %v1045
      %v1050 = vmul.f32 %v1028, %v580
      %v1051 = vmul.f32 %v1029, %v580
      %v1052 = vmul.f32 %v1030, %v580
      %v1056 = vrot.slane %v1050, 2
      %v1057 = vrot.slane %v1051, 2
      %v1058 = vsel %vm484, %v1056, %v1057
      %v1059 = vrot.slane %v1052, 2
      %v1060 = vsel %vm484, %v1057, %v1059
      %v1063 = vadd.f32 %v1048, %v1058
      %v1064 = vadd.f32 %v1049, %v1060
      %v1065 = vadd.f32 %v1063, %v600
      %v1066 = vadd.f32 %v1064, %v600
      %s1067 = scalar_lea.vmem %s194, 64
      %1068 = vst [vmem:[%s1067] sm:$0xff] %v1065
      %1069 = vst [vmem:[%s1067 + $0x8] sm:$0xff] %v1066
      %v1070 = vld [vmem:[%s911] sm:$0xff]
      %v1071 = vld [vmem:[%s911 + $0x8] sm:$0xff]
      %v1072 = vld [vmem:[%s911 + $0x10] sm:$0xff]
      %v1073 = vmul.f32 %v1070, %v451
      %v1074 = vmul.f32 %v1071, %v451
      %v1075 = vmul.f32 %v1070, %v457
      %v1076 = vmul.f32 %v1071, %v457
      %v1077 = vmul.f32 %v1072, %v457
      %v1081 = vrot.slane %v1075, 1
      %v1082 = vrot.slane %v1076, 1
      %v1083 = vsel %vm464, %v1081, %v1082
      %v1084 = vrot.slane %v1077, 1
      %v1085 = vsel %vm464, %v1082, %v1084
      %v1088 = vadd.f32 %v1073, %v1083
      %v1089 = vadd.f32 %v1074, %v1085
      %v1090 = vmul.f32 %v1070, %v477
      %v1091 = vmul.f32 %v1071, %v477
      %v1092 = vmul.f32 %v1072, %v477
      %v1096 = vrot.slane %v1090, 2
      %v1097 = vrot.slane %v1091, 2
      %v1098 = vsel %vm484, %v1096, %v1097
      %v1099 = vrot.slane %v1092, 2
      %v1100 = vsel %vm484, %v1097, %v1099
      %v1103 = vadd.f32 %v1088, %v1098
      %v1104 = vadd.f32 %v1089, %v1100
      %v1105 = vld [vmem:[%s1027] sm:$0xff]
      %v1106 = vld [vmem:[%s1027 + $0x8] sm:$0xff]
      %v1107 = vld [vmem:[%s1027 + $0x10] sm:$0xff]
      %v1108 = vmul.f32 %v1105, %v502
      %v1109 = vmul.f32 %v1106, %v502
      %v1110 = vadd.f32 %v1103, %v1108
      %v1111 = vadd.f32 %v1104, %v1109
      %v1112 = vmul.f32 %v1105, %v510
      %v1113 = vmul.f32 %v1106, %v510
      %v1114 = vmul.f32 %v1107, %v510
      %v1118 = vrot.slane %v1112, 1
      %v1119 = vrot.slane %v1113, 1
      %v1120 = vsel %vm464, %v1118, %v1119
      %v1121 = vrot.slane %v1114, 1
      %v1122 = vsel %vm464, %v1119, %v1121
      %v1125 = vadd.f32 %v1110, %v1120
      %v1126 = vadd.f32 %v1111, %v1122
      %v1127 = vmul.f32 %v1105, %v529
      %v1128 = vmul.f32 %v1106, %v529
      %v1129 = vmul.f32 %v1107, %v529
      %v1133 = vrot.slane %v1127, 2
      %v1134 = vrot.slane %v1128, 2
      %v1135 = vsel %vm484, %v1133, %v1134
      %v1136 = vrot.slane %v1129, 2
      %v1137 = vsel %vm484, %v1134, %v1136
      %v1140 = vadd.f32 %v1125, %v1135
      %v1141 = vadd.f32 %v1126, %v1137
      %s1142 = sadd.s32 168, %s443
      %s1143 = scalar_lea.vmem [#allocation2], %s1142
      %v1144 = vld [vmem:[%s1143] sm:$0xff]
      %v1145 = vld [vmem:[%s1143 + $0x8] sm:$0xff]
      %v1146 = vld [vmem:[%s1143 + $0x10] sm:$0xff]
      %v1147 = vmul.f32 %v1144, %v553
      %v1148 = vmul.f32 %v1145, %v553
      %v1149 = vadd.f32 %v1140, %v1147
      %v1150 = vadd.f32 %v1141, %v1148
      %v1151 = vmul.f32 %v1144, %v561
      %v1152 = vmul.f32 %v1145, %v561
      %v1153 = vmul.f32 %v1146, %v561
      %v1157 = vrot.slane %v1151, 1
      %v1158 = vrot.slane %v1152, 1
      %v1159 = vsel %vm464, %v1157, %v1158
      %v1160 = vrot.slane %v1153, 1
      %v1161 = vsel %vm464, %v1158, %v1160
      %v1164 = vadd.f32 %v1149, %v1159
      %v1165 = vadd.f32 %v1150, %v1161
      %v1166 = vmul.f32 %v1144, %v580
      %v1167 = vmul.f32 %v1145, %v580
      %v1168 = vmul.f32 %v1146, %v580
      %v1172 = vrot.slane %v1166, 2
      %v1173 = vrot.slane %v1167, 2
      %v1174 = vsel %vm484, %v1172, %v1173
      %v1175 = vrot.slane %v1168, 2
      %v1176 = vsel %vm484, %v1173, %v1175
      %v1179 = vadd.f32 %v1164, %v1174
      %v1180 = vadd.f32 %v1165, %v1176
      %v1181 = vadd.f32 %v1179, %v600
      %v1182 = vadd.f32 %v1180, %v600
      %s1183 = scalar_lea.vmem %s194, 80
      %1184 = vst [vmem:[%s1183] sm:$0xff] %v1181
      %1185 = vst [vmem:[%s1183 + $0x8] sm:$0xff] %v1182
      %v1186 = vld [vmem:[%s1027] sm:$0xff]
      %v1187 = vld [vmem:[%s1027 + $0x8] sm:$0xff]
      %v1188 = vld [vmem:[%s1027 + $0x10] sm:$0xff]
      %v1189 = vmul.f32 %v1186, %v451
      %v1190 = vmul.f32 %v1187, %v451
      %v1191 = vmul.f32 %v1186, %v457
      %v1192 = vmul.f32 %v1187, %v457
      %v1193 = vmul.f32 %v1188, %v457
      %v1197 = vrot.slane %v1191, 1
      %v1198 = vrot.slane %v1192, 1
      %v1199 = vsel %vm464, %v1197, %v1198
      %v1200 = vrot.slane %v1193, 1
      %v1201 = vsel %vm464, %v1198, %v1200
      %v1204 = vadd.f32 %v1189, %v1199
      %v1205 = vadd.f32 %v1190, %v1201
      %v1206 = vmul.f32 %v1186, %v477
      %v1207 = vmul.f32 %v1187, %v477
      %v1208 = vmul.f32 %v1188, %v477
      %v1212 = vrot.slane %v1206, 2
      %v1213 = vrot.slane %v1207, 2
      %v1214 = vsel %vm484, %v1212, %v1213
      %v1215 = vrot.slane %v1208, 2
      %v1216 = vsel %vm484, %v1213, %v1215
      %v1219 = vadd.f32 %v1204, %v1214
      %v1220 = vadd.f32 %v1205, %v1216
      %v1221 = vld [vmem:[%s1143] sm:$0xff]
      %v1222 = vld [vmem:[%s1143 + $0x8] sm:$0xff]
      %v1223 = vld [vmem:[%s1143 + $0x10] sm:$0xff]
      %v1224 = vmul.f32 %v1221, %v502
      %v1225 = vmul.f32 %v1222, %v502
      %v1226 = vadd.f32 %v1219, %v1224
      %v1227 = vadd.f32 %v1220, %v1225
      %v1228 = vmul.f32 %v1221, %v510
      %v1229 = vmul.f32 %v1222, %v510
      %v1230 = vmul.f32 %v1223, %v510
      %v1234 = vrot.slane %v1228, 1
      %v1235 = vrot.slane %v1229, 1
      %v1236 = vsel %vm464, %v1234, %v1235
      %v1237 = vrot.slane %v1230, 1
      %v1238 = vsel %vm464, %v1235, %v1237
      %v1241 = vadd.f32 %v1226, %v1236
      %v1242 = vadd.f32 %v1227, %v1238
      %v1243 = vmul.f32 %v1221, %v529
      %v1244 = vmul.f32 %v1222, %v529
      %v1245 = vmul.f32 %v1223, %v529
      %v1249 = vrot.slane %v1243, 2
      %v1250 = vrot.slane %v1244, 2
      %v1251 = vsel %vm484, %v1249, %v1250
      %v1252 = vrot.slane %v1245, 2
      %v1253 = vsel %vm484, %v1250, %v1252
      %v1256 = vadd.f32 %v1241, %v1251
      %v1257 = vadd.f32 %v1242, %v1253
      %s1258 = sadd.s32 192, %s443
      %s1259 = scalar_lea.vmem [#allocation2], %s1258
      %v1260 = vld [vmem:[%s1259] sm:$0xff]
      %v1261 = vld [vmem:[%s1259 + $0x8] sm:$0xff]
      %v1262 = vld [vmem:[%s1259 + $0x10] sm:$0xff]
      %v1263 = vmul.f32 %v1260, %v553
      %v1264 = vmul.f32 %v1261, %v553
      %v1265 = vadd.f32 %v1256, %v1263
      %v1266 = vadd.f32 %v1257, %v1264
      %v1267 = vmul.f32 %v1260, %v561
      %v1268 = vmul.f32 %v1261, %v561
      %v1269 = vmul.f32 %v1262, %v561
      %v1273 = vrot.slane %v1267, 1
      %v1274 = vrot.slane %v1268, 1
      %v1275 = vsel %vm464, %v1273, %v1274
      %v1276 = vrot.slane %v1269, 1
      %v1277 = vsel %vm464, %v1274, %v1276
      %v1280 = vadd.f32 %v1265, %v1275
      %v1281 = vadd.f32 %v1266, %v1277
      %v1282 = vmul.f32 %v1260, %v580
      %v1283 = vmul.f32 %v1261, %v580
      %v1284 = vmul.f32 %v1262, %v580
      %v1288 = vrot.slane %v1282, 2
      %v1289 = vrot.slane %v1283, 2
      %v1290 = vsel %vm484, %v1288, %v1289
      %v1291 = vrot.slane %v1284, 2
      %v1292 = vsel %vm484, %v1289, %v1291
      %v1295 = vadd.f32 %v1280, %v1290
      %v1296 = vadd.f32 %v1281, %v1292
      %v1297 = vadd.f32 %v1295, %v600
      %v1298 = vadd.f32 %v1296, %v600
      %s1299 = scalar_lea.vmem %s194, 96
      %1300 = vst [vmem:[%s1299] sm:$0xff] %v1297
      %1301 = vst [vmem:[%s1299 + $0x8] sm:$0xff] %v1298
      %v1302 = vld [vmem:[%s1143] sm:$0xff]
      %v1303 = vld [vmem:[%s1143 + $0x8] sm:$0xff]
      %v1304 = vld [vmem:[%s1143 + $0x10] sm:$0xff]
      %v1305 = vmul.f32 %v1302, %v451
      %v1306 = vmul.f32 %v1303, %v451
      %v1307 = vmul.f32 %v1302, %v457
      %v1308 = vmul.f32 %v1303, %v457
      %v1309 = vmul.f32 %v1304, %v457
      %v1313 = vrot.slane %v1307, 1
      %v1314 = vrot.slane %v1308, 1
      %v1315 = vsel %vm464, %v1313, %v1314
      %v1316 = vrot.slane %v1309, 1
      %v1317 = vsel %vm464, %v1314, %v1316
      %v1320 = vadd.f32 %v1305, %v1315
      %v1321 = vadd.f32 %v1306, %v1317
      %v1322 = vmul.f32 %v1302, %v477
      %v1323 = vmul.f32 %v1303, %v477
      %v1324 = vmul.f32 %v1304, %v477
      %v1328 = vrot.slane %v1322, 2
      %v1329 = vrot.slane %v1323, 2
      %v1330 = vsel %vm484, %v1328, %v1329
      %v1331 = vrot.slane %v1324, 2
      %v1332 = vsel %vm484, %v1329, %v1331
      %v1335 = vadd.f32 %v1320, %v1330
      %v1336 = vadd.f32 %v1321, %v1332
      %v1337 = vld [vmem:[%s1259] sm:$0xff]
      %v1338 = vld [vmem:[%s1259 + $0x8] sm:$0xff]
      %v1339 = vld [vmem:[%s1259 + $0x10] sm:$0xff]
      %v1340 = vmul.f32 %v1337, %v502
      %v1341 = vmul.f32 %v1338, %v502
      %v1342 = vadd.f32 %v1335, %v1340
      %v1343 = vadd.f32 %v1336, %v1341
      %v1344 = vmul.f32 %v1337, %v510
      %v1345 = vmul.f32 %v1338, %v510
      %v1346 = vmul.f32 %v1339, %v510
      %v1350 = vrot.slane %v1344, 1
      %v1351 = vrot.slane %v1345, 1
      %v1352 = vsel %vm464, %v1350, %v1351
      %v1353 = vrot.slane %v1346, 1
      %v1354 = vsel %vm464, %v1351, %v1353
      %v1357 = vadd.f32 %v1342, %v1352
      %v1358 = vadd.f32 %v1343, %v1354
      %v1359 = vmul.f32 %v1337, %v529
      %v1360 = vmul.f32 %v1338, %v529
      %v1361 = vmul.f32 %v1339, %v529
      %v1365 = vrot.slane %v1359, 2
      %v1366 = vrot.slane %v1360, 2
      %v1367 = vsel %vm484, %v1365, %v1366
      %v1368 = vrot.slane %v1361, 2
      %v1369 = vsel %vm484, %v1366, %v1368
      %v1372 = vadd.f32 %v1357, %v1367
      %v1373 = vadd.f32 %v1358, %v1369
      %s1374 = sadd.s32 216, %s443
      %s1375 = scalar_lea.vmem [#allocation2], %s1374
      %v1376 = vld [vmem:[%s1375] sm:$0xff]
      %v1377 = vld [vmem:[%s1375 + $0x8] sm:$0xff]
      %v1378 = vld [vmem:[%s1375 + $0x10] sm:$0xff]
      %v1379 = vmul.f32 %v1376, %v553
      %v1380 = vmul.f32 %v1377, %v553
      %v1381 = vadd.f32 %v1372, %v1379
      %v1382 = vadd.f32 %v1373, %v1380
      %v1383 = vmul.f32 %v1376, %v561
      %v1384 = vmul.f32 %v1377, %v561
      %v1385 = vmul.f32 %v1378, %v561
      %v1389 = vrot.slane %v1383, 1
      %v1390 = vrot.slane %v1384, 1
      %v1391 = vsel %vm464, %v1389, %v1390
      %v1392 = vrot.slane %v1385, 1
      %v1393 = vsel %vm464, %v1390, %v1392
      %v1396 = vadd.f32 %v1381, %v1391
      %v1397 = vadd.f32 %v1382, %v1393
      %v1398 = vmul.f32 %v1376, %v580
      %v1399 = vmul.f32 %v1377, %v580
      %v1400 = vmul.f32 %v1378, %v580
      %v1404 = vrot.slane %v1398, 2
      %v1405 = vrot.slane %v1399, 2
      %v1406 = vsel %vm484, %v1404, %v1405
      %v1407 = vrot.slane %v1400, 2
      %v1408 = vsel %vm484, %v1405, %v1407
      %v1411 = vadd.f32 %v1396, %v1406
      %v1412 = vadd.f32 %v1397, %v1408
      %v1413 = vadd.f32 %v1411, %v600
      %v1414 = vadd.f32 %v1412, %v600
      %s1415 = scalar_lea.vmem %s194, 112
      %1416 = vst [vmem:[%s1415] sm:$0xff] %v1413
      %1417 = vst [vmem:[%s1415 + $0x8] sm:$0xff] %v1414
      %s1418 = smul.u32 8, %s21
      %p1419 = scmp.lt.s32.totalorder %s19, 1
      %s1420 = scalar_select %p1419, %s19, 1
      %p1421 = scmp.lt.s32.totalorder %s1418, 15
      %s1422 = scalar_select %p1421, %s1418, 15
      %p1423 = scmp.lt.s32.totalorder %s20, 0
      %s1424 = scalar_select %p1423, %s20, 0
      %s1425 = smul.addr %s1422, 2
      %s1426 = sadd.s32 %s1424, %s1425
      %s1427 = smul.addr %s1420, 32
      %s1428 = sadd.s32 %s1426, %s1427
      %s1429 = smul.addr %s1428, 8
      %s1430 = scalar_lea.vmem %s3, %s1429
      // Predicated region
      $region105: #{depthwise_conv2d.1} parent=27 // pred_check
        %p1431 = pneg %p107
      $region106: #{depthwise_conv2d.1} parent=27 // pred_check_branch
        %1433 = sbr.rel (%p1431) target = $region108
      $region107: #{depthwise_conv2d.1} parent=27 // pred_region
        %s1434 = smul.u32 8, %s21
      $region108: #{depthwise_conv2d.1} parent=27 // pred_fallthru
        _
    $region28: #{depthwise_conv2d.1} parent=5 // pred_fallthru
      _
    %p1435 = scmp.le.s32.totalorder 2, %s9
    // Predicated region
    $region109: #{depthwise_conv2d.1} parent=5 // pred_check
      %p1436 = pneg %p1435
    $region110: #{depthwise_conv2d.1} parent=5 // pred_check_branch
      %1438 = sbr.rel (%p1436) target = $region112
    $region111: #{depthwise_conv2d.1} parent=5 // pred_region
      %s1439 = ssub.s32 %s9, 2
      // Predicated region
      $region113: #{depthwise_conv2d.1} parent=111 // pred_check
        %p1440 = pneg %p113
      $region114: #{depthwise_conv2d.1} parent=111 // pred_check_branch
        %1442 = sbr.rel (%p1440) target = $region116
      $region115: #{depthwise_conv2d.1} parent=111 // pred_region
        %s1443 = smul.u32 8, %s24
        %p1444 = scmp.lt.s32.totalorder %s22, 1
        %s1445 = scalar_select %p1444, %s22, 1
        %p1446 = scmp.lt.s32.totalorder %s1443, 15
        %s1447 = scalar_select %p1446, %s1443, 15
        %p1448 = scmp.lt.s32.totalorder %s23, 0
        %s1449 = scalar_select %p1448, %s23, 0
        %s1450 = smul.addr %s1447, 2
        %s1451 = sadd.s32 %s1449, %s1450
        %s1452 = smul.addr %s1445, 32
        %s1453 = sadd.s32 %s1451, %s1452
        %s1454 = smul.addr %s1453, 8
        %s1455 = scalar_lea.vmem %s3, %s1454
      $region116: #{depthwise_conv2d.1} parent=111 // pred_fallthru
        _
    $region112: #{depthwise_conv2d.1} parent=5 // pred_fallthru
      _
  $region6: #{depthwise_conv2d.1} parent=0 // loop_footer
    %s13 = sadd.s32 1, %s9
  $region7: #{depthwise_conv2d.1} parent=0 // loop_footer_branch
    %8 = sbr.rel target = $region3
  $region8: #{depthwise_conv2d.1} parent=0 // loop_exit
    _
  %1456 = vsyncmov [#allocation3]
  %s1457 = vpop.sfrf %1456
  %p1458 = scmp.eq.s32.totalorder %s1457, 0
  %p1459 = pneg %p1458
  %1461 = shalt.err (%p1459)
  %s1462 = scalar_lea.sflag [#allocation3], 1
  %1463 = vsyncmov %s1462
  %s1464 = vpop.sfrf %1463
  %p1465 = scmp.eq.s32.totalorder %s1464, 0
  %p1466 = pneg %p1465
  %1468 = shalt.err (%p1466)

</llo_original>
